<compile_context>
chip_gen: v7x
topology: tpu7x:2x2x1
jax: 0.10.0
libtpu: 0.0.40
codegen_flags: <defaults>
</compile_context>

<pallas_src>
import functools

import jax
import jax.numpy as jnp
import numpy as np
from jax.experimental import pallas as pl
from jax.experimental.pallas import tpu as pltpu

K_DIM = 64  # self.k in the PyTorch module


def _ea_stats_kernel(x_ref, w1_ref, b1_ref, w0_ref,
                     s_ref, m_ref, l_ref,
                     m_sc, l_sc):
    """Pass 1: scores s = W0 @ (W1 @ x + b1) and online softmax stats over N."""
    j = pl.program_id(1)

    @pl.when(j == 0)
    def _():
        m_sc[...] = jnp.full_like(m_sc, -jnp.inf)
        l_sc[...] = jnp.zeros_like(l_sc)

    x = x_ref[0].astype(w1_ref.dtype)                        # (C, bn)
    # conv1 (1x1, with bias): y = W1 @ x + b1
    y = jnp.dot(w1_ref[...], x,
                preferred_element_type=jnp.float32) + b1_ref[...]      # (C, bn)
    # linear_0 (Conv1d c->k, no bias): s = W0 @ y
    s = jnp.dot(w0_ref[...], y.astype(w0_ref.dtype),
                preferred_element_type=jnp.float32)                    # (K, bn)
    s_ref[0] = s.astype(s_ref.dtype)

    # flash-style running max / sum over the spatial (lane) axis.
    m_prev = m_sc[...]
    m_new = jnp.maximum(m_prev, jnp.max(s, axis=-1, keepdims=True))
    l_sc[...] = (l_sc[...] * jnp.exp(m_prev - m_new)
                 + jnp.sum(jnp.exp(s - m_new), axis=-1, keepdims=True))
    m_sc[...] = m_new

    @pl.when(j == pl.num_programs(1) - 1)
    def _():
        m_ref[0] = m_sc[...]
        l_ref[0] = l_sc[...]


def _ea_apply_kernel(x_ref, s_ref, m_ref, l_ref,
                     w0t_ref, wc2f_ref, shift_ref, o_ref):
    """Pass 2: softmax -> k-norm -> linear_1 -> conv2(+BN) -> residual -> relu."""
    x = x_ref[0].astype(jnp.float32)                          # (C, bn), residual
    s = s_ref[0]                                              # (K, bn)

    # softmax over the spatial axis with global stats (reciprocal on EUP).
    attn = jnp.exp(s - m_ref[0]) * pl.reciprocal(l_ref[0], approx=True)
    # normalization over k (sublane axis): attn / (1e-9 + sum_k attn)
    denom = 1e-9 + jnp.sum(attn, axis=0, keepdims=True)       # (1, bn)
    attn = attn * pl.reciprocal(denom, approx=True)

    # linear_1 (shared linear_0 weight, transposed once in the wrapper)
    z = jnp.dot(w0t_ref[...], attn.astype(w0t_ref.dtype),
                preferred_element_type=jnp.float32)           # (C, bn)
    # conv2 (1x1, no bias) with BN scale folded into the weight, plus BN shift
    z = jnp.dot(wc2f_ref[...], z.astype(wc2f_ref.dtype),
                preferred_element_type=jnp.float32) + shift_ref[...]
    # residual with the ORIGINAL input, then ReLU
    o_ref[0] = jnp.maximum(z + x, 0.0).astype(o_ref.dtype)


@functools.partial(jax.jit, static_argnames=("block_n", "compute_dtype"))
def external_attention(x_nchw, w1, b1, w0, wc2, bn_scale, bn_shift, *,
                       block_n=None, compute_dtype=jnp.float32):
    b, c, h, w = x_nchw.shape
    n = h * w
    if block_n is None:
        block_n = n
        for cand in (512, 256, 128):
            if n % cand == 0:
                block_n = cand
                break
    assert n % block_n == 0, "spatial size must be divisible by block_n"
    n_tiles = n // block_n

    # (B, C, H, W) -> (B, C, N): contiguous reshape, no HBM transpose.
    x = x_nchw.reshape(b, c, n)

    # One-time (trace-time) weight prep: orientation + BN folding + dtype.
    w1c = w1.astype(compute_dtype)                          # (C, C)
    b1c = b1.reshape(c, 1).astype(jnp.float32)              # (C, 1)
    w0c = w0.astype(compute_dtype)                          # (K, C)
    w0t = w0.T.astype(compute_dtype)                        # (C, K)  linear_1
    wc2f = (bn_scale.reshape(c, 1) * wc2).astype(compute_dtype)  # BN scale folded
    shiftc = bn_shift.reshape(c, 1).astype(jnp.float32)     # (C, 1)

    # ---- Pass 1: attention scores + online softmax statistics over N ----
    s_scores, m_stat, l_stat = pl.pallas_call(
        _ea_stats_kernel,
        out_shape=(
            jax.ShapeDtypeStruct((b, K_DIM, n), jnp.float32),
            jax.ShapeDtypeStruct((b, K_DIM, 1), jnp.float32),
            jax.ShapeDtypeStruct((b, K_DIM, 1), jnp.float32),
        ),
        grid_spec=pltpu.PrefetchScalarGridSpec(
            num_scalar_prefetch=0,
            grid=(b, n_tiles),
            in_specs=[
                pl.BlockSpec((1, c, block_n), lambda i, j: (i, 0, j)),   # x
                # Grid-invariant weights (pl.Buffered(1) would save one pipeline
                # buffer each; omitted for portability across jax versions).
                pl.BlockSpec((c, c), lambda i, j: (0, 0)),               # W1
                pl.BlockSpec((c, 1), lambda i, j: (0, 0)),               # b1
                pl.BlockSpec((K_DIM, c), lambda i, j: (0, 0)),           # W0
            ],
            out_specs=[
                pl.BlockSpec((1, K_DIM, block_n), lambda i, j: (i, 0, j)),  # s
                pl.BlockSpec((1, K_DIM, 1), lambda i, j: (i, 0, 0)),        # m
                pl.BlockSpec((1, K_DIM, 1), lambda i, j: (i, 0, 0)),        # l
            ],
            scratch_shapes=[pltpu.VMEM((K_DIM, 1), jnp.float32),
                            pltpu.VMEM((K_DIM, 1), jnp.float32)],
        ),
        compiler_params=pltpu.CompilerParams(
            dimension_semantics=("parallel", "arbitrary")),
    )(x, w1c, b1c, w0c)

    # ---- Pass 2: finish softmax, normalize, project, BN, residual, ReLU ----
    out = pl.pallas_call(
        _ea_apply_kernel,
        out_shape=jax.ShapeDtypeStruct((b, c, n), x.dtype),
        grid_spec=pltpu.PrefetchScalarGridSpec(
            num_scalar_prefetch=0,
            grid=(b, n_tiles),
            in_specs=[
                pl.BlockSpec((1, c, block_n), lambda i, j: (i, 0, j)),       # x
                pl.BlockSpec((1, K_DIM, block_n), lambda i, j: (i, 0, j)),   # s
                pl.BlockSpec((1, K_DIM, 1), lambda i, j: (i, 0, 0)),         # m
                pl.BlockSpec((1, K_DIM, 1), lambda i, j: (i, 0, 0)),         # l
                pl.BlockSpec((c, K_DIM), lambda i, j: (0, 0)),               # W0^T
                pl.BlockSpec((c, c), lambda i, j: (0, 0)),                   # Wc2*scale
                pl.BlockSpec((c, 1), lambda i, j: (0, 0)),                   # shift
            ],
            out_specs=pl.BlockSpec((1, c, block_n), lambda i, j: (i, 0, j)),
        ),
        compiler_params=pltpu.CompilerParams(
            dimension_semantics=("parallel", "parallel")),
    )(x, s_scores, m_stat, l_stat, w0t, wc2f, shiftc)

    # (B, C, N) -> NCHW: contiguous reshape, no transpose.
    return out.reshape(b, c, h, w)


def ref_forward(x, w1, b1, w0, wc2, scale, shift):
    """Pure-JAX reference mirroring the PyTorch forward (eval-mode BN)."""
    bsz, c, h, w = x.shape
    n = h * w
    idn = x
    y = jnp.einsum('oi,bihw->bohw', w1, x) + b1.reshape(1, c, 1, 1)
    y = y.reshape(bsz, c, n)
    attn = jnp.einsum('kc,bcn->bkn', w0, y)
    attn = jax.nn.softmax(attn, axis=-1)
    attn = attn / (1e-9 + attn.sum(axis=1, keepdims=True))
    z = jnp.einsum('kc,bkn->bcn', w0, attn)     # linear_1 weight = W0^T
    z = z.reshape(bsz, c, h, w)
    z = jnp.einsum('oi,bihw->bohw', wc2, z)
    z = z * scale.reshape(1, c, 1, 1) + shift.reshape(1, c, 1, 1)
    return jnp.maximum(z + idn, 0.0)


if __name__ == "__main__":
    B, C, H, W = 2, 4, 16, 16

    key = jax.random.PRNGKey(0)
    kx, k1, kb1, k0, k2 = jax.random.split(key, 5)

    x = jax.random.normal(kx, (B, C, H, W), dtype=jnp.float32)

    # conv1: Conv2d(C, C, 1)  -> weight (C, C), bias (C,)
    w1 = jax.random.normal(k1, (C, C), dtype=jnp.float32) * 0.3
    b1 = jax.random.normal(kb1, (C,), dtype=jnp.float32) * 0.1
    # linear_0: Conv1d(C, 64, 1, bias=False) -> weight (64, C); linear_1 shares it (transposed)
    w0 = jax.random.normal(k0, (K_DIM, C), dtype=jnp.float32) * 0.3
    # conv2[0]: Conv2d(C, C, 1, bias=False) -> weight (C, C)
    wc2 = jax.random.normal(k2, (C, C), dtype=jnp.float32) * 0.3
    # conv2[1]: BatchNorm2d(C) eval-mode with default stats/affine:
    eps = 1e-5
    bn_scale = jnp.ones((C,), jnp.float32) / jnp.sqrt(jnp.ones((C,), jnp.float32) + eps)
    bn_shift = jnp.zeros((C,), jnp.float32)

    # block_n=128 -> 2 spatial tiles: exercises the cross-tile (online) softmax.
    out = external_attention(x, w1, b1, w0, wc2, bn_scale, bn_shift,
                             block_n=128)
    out = jax.block_until_ready(out)

    ref = ref_forward(x, w1, b1, w0, wc2, bn_scale, bn_shift)
    # approx=True reciprocals (EUP) trade a little precision for VALU cycles.
    np.testing.assert_allclose(np.asarray(out), np.asarray(ref),
                               rtol=2e-2, atol=2e-2)

    print("KERNEL_OK")
</pallas_src>

<mosaic_0001>
module attributes {stable_mosaic.version = 11 : i64} {
  func.func @_ea_stats_kernel(%arg0: i32, %arg1: i32, %arg2: memref<1x4x128xf32, #tpu.memory_space<vmem>>, %arg3: memref<4x4xf32, #tpu.memory_space<vmem>>, %arg4: memref<4x1xf32, #tpu.memory_space<vmem>>, %arg5: memref<64x4xf32, #tpu.memory_space<vmem>>, %arg6: memref<1x64x128xf32, #tpu.memory_space<vmem>>, %arg7: memref<1x64x1xf32, #tpu.memory_space<vmem>>, %arg8: memref<1x64x1xf32, #tpu.memory_space<vmem>>, %arg9: memref<64x1xf32, #tpu.memory_space<vmem>>, %arg10: memref<64x1xf32, #tpu.memory_space<vmem>>) attributes {dimension_semantics = [#tpu.dimension_semantics<parallel>, #tpu.dimension_semantics<arbitrary>], iteration_bounds = array<i64: 2, 2>, scalar_prefetch = 0 : i64, scratch_operands = 2 : i64, tpu.core_type = #tpu.core_type<tc>, window_params = [{transform_indices = @transform_0, window_bounds = array<i64: 1, 4, 128>}, {pipeline_mode = #tpu.pipeline_mode<synchronous>, transform_indices = @transform_1, window_bounds = array<i64: 4, 4>}, {pipeline_mode = #tpu.pipeline_mode<synchronous>, transform_indices = @transform_2, window_bounds = array<i64: 4, 1>}, {pipeline_mode = #tpu.pipeline_mode<synchronous>, transform_indices = @transform_3, window_bounds = array<i64: 64, 4>}, {transform_indices = @transform_4, window_bounds = array<i64: 1, 64, 128>}, {transform_indices = @transform_5, window_bounds = array<i64: 1, 64, 1>}, {transform_indices = @transform_6, window_bounds = array<i64: 1, 64, 1>}]} {
    %c0_i32 = arith.constant 0 : i32
    %0 = arith.cmpi eq, %arg1, %c0_i32 : i32
    %1 = arith.extui %0 : i1 to i32
    %c0_i32_0 = arith.constant 0 : i32
    %2 = arith.cmpi ne, %1, %c0_i32_0 : i32
    scf.if %2 {
      %cst_24 = arith.constant 0xFF800000 : f32
      %34 = vector.broadcast %cst_24 : f32 to vector<64x1xf32>
      %c0_25 = arith.constant 0 : index
      %c0_26 = arith.constant 0 : index
      %35 = vector.load %arg9[%c0_25, %c0_26] : memref<64x1xf32, #tpu.memory_space<vmem>>, vector<64x1xf32>
      tpu.vector_store %arg9[%c0_25, %c0_26], %34 {strides = array<i32>} : memref<64x1xf32, #tpu.memory_space<vmem>>, vector<64x1xf32>,
      %cst_27 = arith.constant 0.000000e+00 : f32
      %36 = vector.broadcast %cst_27 : f32 to vector<64x1xf32>
      %c0_28 = arith.constant 0 : index
      %c0_29 = arith.constant 0 : index
      %37 = vector.load %arg10[%c0_28, %c0_29] : memref<64x1xf32, #tpu.memory_space<vmem>>, vector<64x1xf32>
      tpu.vector_store %arg10[%c0_28, %c0_29], %36 {strides = array<i32>} : memref<64x1xf32, #tpu.memory_space<vmem>>, vector<64x1xf32>,
    } else {
    }
    %c0 = arith.constant 0 : index
    %c0_1 = arith.constant 0 : index
    %c0_2 = arith.constant 0 : index
    %3 = vector.load %arg2[%c0, %c0_1, %c0_2] : memref<1x4x128xf32, #tpu.memory_space<vmem>>, vector<1x4x128xf32>
    %4 = vector.shape_cast %3 : vector<1x4x128xf32> to vector<4x128xf32>
    %c0_3 = arith.constant 0 : index
    %c0_4 = arith.constant 0 : index
    %5 = vector.load %arg3[%c0_3, %c0_4] : memref<4x4xf32, #tpu.memory_space<vmem>>, vector<4x4xf32>
    %cst = arith.constant dense<0.000000e+00> : vector<4x128xf32>
    %6 = tpu.matmul %5, %4, %cst {dimension_numbers = #tpu.dot_dimension_numbers<[1], [0], [0], [1], [0, 0, 1, 1], [], []>} : vector<4x4xf32>, vector<4x128xf32>, vector<4x128xf32> -> vector<4x128xf32>
    %c0_5 = arith.constant 0 : index
    %c0_6 = arith.constant 0 : index
    %7 = vector.load %arg4[%c0_5, %c0_6] : memref<4x1xf32, #tpu.memory_space<vmem>>, vector<4x1xf32>
    %8 = vector.broadcast %7 : vector<4x1xf32> to vector<4x128xf32>
    %9 = arith.addf %6, %8 : vector<4x128xf32>
    %c0_7 = arith.constant 0 : index
    %c0_8 = arith.constant 0 : index
    %10 = vector.load %arg5[%c0_7, %c0_8] : memref<64x4xf32, #tpu.memory_space<vmem>>, vector<64x4xf32>
    %cst_9 = arith.constant dense<0.000000e+00> : vector<64x128xf32>
    %11 = tpu.matmul %10, %9, %cst_9 {dimension_numbers = #tpu.dot_dimension_numbers<[1], [0], [0], [1], [0, 0, 1, 1], [], []>} : vector<64x4xf32>, vector<4x128xf32>, vector<64x128xf32> -> vector<64x128xf32>
    %c0_10 = arith.constant 0 : index
    %c0_11 = arith.constant 0 : index
    %c0_12 = arith.constant 0 : index
    %12 = vector.load %arg6[%c0_10, %c0_11, %c0_12] : memref<1x64x128xf32, #tpu.memory_space<vmem>>, vector<1x64x128xf32>
    %13 = vector.shape_cast %12 : vector<1x64x128xf32> to vector<64x128xf32>
    %14 = vector.shape_cast %11 : vector<64x128xf32> to vector<1x64x128xf32>
    tpu.vector_store %arg6[%c0_10, %c0_11, %c0_12], %14 {strides = array<i32>} : memref<1x64x128xf32, #tpu.memory_space<vmem>>, vector<1x64x128xf32>,
    %c0_13 = arith.constant 0 : index
    %c0_14 = arith.constant 0 : index
    %15 = vector.load %arg9[%c0_13, %c0_14] : memref<64x1xf32, #tpu.memory_space<vmem>>, vector<64x1xf32>
    %cst_15 = arith.constant dense<0xFF800000> : vector<64xf32>
    %16 = vector.multi_reduction <maximumf>, %11, %cst_15 [1] : vector<64x128xf32> to vector<64xf32>
    %17 = vector.shape_cast %16 : vector<64xf32> to vector<64x1xf32>
    %18 = arith.maximumf %15, %17 : vector<64x1xf32>
    %c0_16 = arith.constant 0 : index
    %c0_17 = arith.constant 0 : index
    %19 = vector.load %arg10[%c0_16, %c0_17] : memref<64x1xf32, #tpu.memory_space<vmem>>, vector<64x1xf32>
    %20 = arith.subf %15, %18 : vector<64x1xf32>
    %21 = math.exp %20 : vector<64x1xf32>
    %22 = arith.mulf %19, %21 : vector<64x1xf32>
    %23 = vector.broadcast %18 : vector<64x1xf32> to vector<64x128xf32>
    %24 = arith.subf %11, %23 : vector<64x128xf32>
    %25 = math.exp %24 : vector<64x128xf32>
    %cst_18 = arith.constant dense<0.000000e+00> : vector<64xf32>
    %26 = vector.multi_reduction <add>, %25, %cst_18 [1] : vector<64x128xf32> to vector<64xf32>
    %27 = vector.shape_cast %26 : vector<64xf32> to vector<64x1xf32>
    %28 = arith.addf %22, %27 : vector<64x1xf32>
    %c0_19 = arith.constant 0 : index
    %c0_20 = arith.constant 0 : index
    %29 = vector.load %arg10[%c0_19, %c0_20] : memref<64x1xf32, #tpu.memory_space<vmem>>, vector<64x1xf32>
    tpu.vector_store %arg10[%c0_19, %c0_20], %28 {strides = array<i32>} : memref<64x1xf32, #tpu.memory_space<vmem>>, vector<64x1xf32>,
    %c0_21 = arith.constant 0 : index
    %c0_22 = arith.constant 0 : index
    %30 = vector.load %arg9[%c0_21, %c0_22] : memref<64x1xf32, #tpu.memory_space<vmem>>, vector<64x1xf32>
    tpu.vector_store %arg9[%c0_21, %c0_22], %18 {strides = array<i32>} : memref<64x1xf32, #tpu.memory_space<vmem>>, vector<64x1xf32>,
    %c1_i32 = arith.constant 1 : i32
    %31 = arith.cmpi eq, %arg1, %c1_i32 : i32
    %32 = arith.extui %31 : i1 to i32
    %c0_i32_23 = arith.constant 0 : i32
    %33 = arith.cmpi ne, %32, %c0_i32_23 : i32
    scf.if %33 {
      %c0_24 = arith.constant 0 : index
      %c0_25 = arith.constant 0 : index
      %34 = vector.load %arg9[%c0_24, %c0_25] : memref<64x1xf32, #tpu.memory_space<vmem>>, vector<64x1xf32>
      %c0_26 = arith.constant 0 : index
      %c0_27 = arith.constant 0 : index
      %c0_28 = arith.constant 0 : index
      %35 = vector.load %arg7[%c0_26, %c0_27, %c0_28] : memref<1x64x1xf32, #tpu.memory_space<vmem>>, vector<1x64x1xf32>
      %36 = vector.shape_cast %35 : vector<1x64x1xf32> to vector<64x1xf32>
      %37 = vector.shape_cast %34 : vector<64x1xf32> to vector<1x64x1xf32>
      tpu.vector_store %arg7[%c0_26, %c0_27, %c0_28], %37 {strides = array<i32>} : memref<1x64x1xf32, #tpu.memory_space<vmem>>, vector<1x64x1xf32>,
      %c0_29 = arith.constant 0 : index
      %c0_30 = arith.constant 0 : index
      %38 = vector.load %arg10[%c0_29, %c0_30] : memref<64x1xf32, #tpu.memory_space<vmem>>, vector<64x1xf32>
      %c0_31 = arith.constant 0 : index
      %c0_32 = arith.constant 0 : index
      %c0_33 = arith.constant 0 : index
      %39 = vector.load %arg8[%c0_31, %c0_32, %c0_33] : memref<1x64x1xf32, #tpu.memory_space<vmem>>, vector<1x64x1xf32>
      %40 = vector.shape_cast %39 : vector<1x64x1xf32> to vector<64x1xf32>
      %41 = vector.shape_cast %38 : vector<64x1xf32> to vector<1x64x1xf32>
      tpu.vector_store %arg8[%c0_31, %c0_32, %c0_33], %41 {strides = array<i32>} : memref<1x64x1xf32, #tpu.memory_space<vmem>>, vector<1x64x1xf32>,
    } else {
    }
    return
  }
  func.func @transform_0(%arg0: i32, %arg1: i32) -> (i32, i32, i32) {
    %c0_i32 = arith.constant 0 : i32
    %c0_i32_0 = arith.constant 0 : i32
    return %arg0, %c0_i32, %arg1 : i32, i32, i32
  }
  func.func @transform_1(%arg0: i32, %arg1: i32) -> (i32, i32) {
    %c0_i32 = arith.constant 0 : i32
    %c0_i32_0 = arith.constant 0 : i32
    %c0_i32_1 = arith.constant 0 : i32
    return %c0_i32, %c0_i32_0 : i32, i32
  }
  func.func @transform_2(%arg0: i32, %arg1: i32) -> (i32, i32) {
    %c0_i32 = arith.constant 0 : i32
    %c0_i32_0 = arith.constant 0 : i32
    %c0_i32_1 = arith.constant 0 : i32
    return %c0_i32, %c0_i32_0 : i32, i32
  }
  func.func @transform_3(%arg0: i32, %arg1: i32) -> (i32, i32) {
    %c0_i32 = arith.constant 0 : i32
    %c0_i32_0 = arith.constant 0 : i32
    %c0_i32_1 = arith.constant 0 : i32
    return %c0_i32, %c0_i32_0 : i32, i32
  }
  func.func @transform_4(%arg0: i32, %arg1: i32) -> (i32, i32, i32) {
    %c0_i32 = arith.constant 0 : i32
    %c0_i32_0 = arith.constant 0 : i32
    return %arg0, %c0_i32, %arg1 : i32, i32, i32
  }
  func.func @transform_5(%arg0: i32, %arg1: i32) -> (i32, i32, i32) {
    %c0_i32 = arith.constant 0 : i32
    %c0_i32_0 = arith.constant 0 : i32
    %c0_i32_1 = arith.constant 0 : i32
    return %arg0, %c0_i32, %c0_i32_0 : i32, i32, i32
  }
  func.func @transform_6(%arg0: i32, %arg1: i32) -> (i32, i32, i32) {
    %c0_i32 = arith.constant 0 : i32
    %c0_i32_0 = arith.constant 0 : i32
    %c0_i32_1 = arith.constant 0 : i32
    return %arg0, %c0_i32, %c0_i32_0 : i32, i32, i32
  }
}

module attributes {stable_mosaic.version = 11 : i64} {
  func.func @_ea_apply_kernel(%arg0: i32, %arg1: i32, %arg2: memref<1x4x128xf32, #tpu.memory_space<vmem>>, %arg3: memref<1x64x128xf32, #tpu.memory_space<vmem>>, %arg4: memref<1x64x1xf32, #tpu.memory_space<vmem>>, %arg5: memref<1x64x1xf32, #tpu.memory_space<vmem>>, %arg6: memref<4x64xf32, #tpu.memory_space<vmem>>, %arg7: memref<4x4xf32, #tpu.memory_space<vmem>>, %arg8: memref<4x1xf32, #tpu.memory_space<vmem>>, %arg9: memref<1x4x128xf32, #tpu.memory_space<vmem>>) attributes {dimension_semantics = [#tpu.dimension_semantics<parallel>, #tpu.dimension_semantics<parallel>], iteration_bounds = array<i64: 2, 2>, scalar_prefetch = 0 : i64, scratch_operands = 0 : i64, tpu.core_type = #tpu.core_type<tc>, window_params = [{transform_indices = @transform_0, window_bounds = array<i64: 1, 4, 128>}, {transform_indices = @transform_1, window_bounds = array<i64: 1, 64, 128>}, {transform_indices = @transform_2, window_bounds = array<i64: 1, 64, 1>}, {transform_indices = @transform_3, window_bounds = array<i64: 1, 64, 1>}, {pipeline_mode = #tpu.pipeline_mode<synchronous>, transform_indices = @transform_4, window_bounds = array<i64: 4, 64>}, {pipeline_mode = #tpu.pipeline_mode<synchronous>, transform_indices = @transform_5, window_bounds = array<i64: 4, 4>}, {pipeline_mode = #tpu.pipeline_mode<synchronous>, transform_indices = @transform_6, window_bounds = array<i64: 4, 1>}, {transform_indices = @transform_7, window_bounds = array<i64: 1, 4, 128>}]} {
    %c0 = arith.constant 0 : index
    %c0_0 = arith.constant 0 : index
    %c0_1 = arith.constant 0 : index
    %0 = vector.load %arg2[%c0, %c0_0, %c0_1] : memref<1x4x128xf32, #tpu.memory_space<vmem>>, vector<1x4x128xf32>
    %1 = vector.shape_cast %0 : vector<1x4x128xf32> to vector<4x128xf32>
    %c0_2 = arith.constant 0 : index
    %c0_3 = arith.constant 0 : index
    %c0_4 = arith.constant 0 : index
    %2 = vector.load %arg3[%c0_2, %c0_3, %c0_4] : memref<1x64x128xf32, #tpu.memory_space<vmem>>, vector<1x64x128xf32>
    %3 = vector.shape_cast %2 : vector<1x64x128xf32> to vector<64x128xf32>
    %c0_5 = arith.constant 0 : index
    %c0_6 = arith.constant 0 : index
    %c0_7 = arith.constant 0 : index
    %4 = vector.load %arg4[%c0_5, %c0_6, %c0_7] : memref<1x64x1xf32, #tpu.memory_space<vmem>>, vector<1x64x1xf32>
    %5 = vector.shape_cast %4 : vector<1x64x1xf32> to vector<64x1xf32>
    %6 = vector.broadcast %5 : vector<64x1xf32> to vector<64x128xf32>
    %7 = arith.subf %3, %6 : vector<64x128xf32>
    %8 = math.exp %7 : vector<64x128xf32>
    %c0_8 = arith.constant 0 : index
    %c0_9 = arith.constant 0 : index
    %c0_10 = arith.constant 0 : index
    %9 = vector.load %arg5[%c0_8, %c0_9, %c0_10] : memref<1x64x1xf32, #tpu.memory_space<vmem>>, vector<1x64x1xf32>
    %10 = vector.shape_cast %9 : vector<1x64x1xf32> to vector<64x1xf32>
    %11 = tpu.reciprocal %10 {approx = true} : vector<64x1xf32> -> vector<64x1xf32>
    %12 = vector.broadcast %11 : vector<64x1xf32> to vector<64x128xf32>
    %13 = arith.mulf %8, %12 : vector<64x128xf32>
    %cst = arith.constant dense<0.000000e+00> : vector<128xf32>
    %14 = vector.multi_reduction <add>, %13, %cst [0] : vector<64x128xf32> to vector<128xf32>
    %15 = vector.shape_cast %14 : vector<128xf32> to vector<1x128xf32>
    %cst_11 = arith.constant 9.99999971E-10 : f32
    %16 = vector.broadcast %cst_11 : f32 to vector<1x128xf32>
    %17 = arith.addf %16, %15 : vector<1x128xf32>
    %18 = tpu.reciprocal %17 {approx = true} : vector<1x128xf32> -> vector<1x128xf32>
    %19 = vector.broadcast %18 : vector<1x128xf32> to vector<64x128xf32>
    %20 = arith.mulf %13, %19 : vector<64x128xf32>
    %c0_12 = arith.constant 0 : index
    %c0_13 = arith.constant 0 : index
    %21 = vector.load %arg6[%c0_12, %c0_13] : memref<4x64xf32, #tpu.memory_space<vmem>>, vector<4x64xf32>
    %cst_14 = arith.constant dense<0.000000e+00> : vector<4x128xf32>
    %22 = tpu.matmul %21, %20, %cst_14 {dimension_numbers = #tpu.dot_dimension_numbers<[1], [0], [0], [1], [0, 0, 1, 1], [], []>} : vector<4x64xf32>, vector<64x128xf32>, vector<4x128xf32> -> vector<4x128xf32>
    %c0_15 = arith.constant 0 : index
    %c0_16 = arith.constant 0 : index
    %23 = vector.load %arg7[%c0_15, %c0_16] : memref<4x4xf32, #tpu.memory_space<vmem>>, vector<4x4xf32>
    %cst_17 = arith.constant dense<0.000000e+00> : vector<4x128xf32>
    %24 = tpu.matmul %23, %22, %cst_17 {dimension_numbers = #tpu.dot_dimension_numbers<[1], [0], [0], [1], [0, 0, 1, 1], [], []>} : vector<4x4xf32>, vector<4x128xf32>, vector<4x128xf32> -> vector<4x128xf32>
    %c0_18 = arith.constant 0 : index
    %c0_19 = arith.constant 0 : index
    %25 = vector.load %arg8[%c0_18, %c0_19] : memref<4x1xf32, #tpu.memory_space<vmem>>, vector<4x1xf32>
    %26 = vector.broadcast %25 : vector<4x1xf32> to vector<4x128xf32>
    %27 = arith.addf %24, %26 : vector<4x128xf32>
    %28 = arith.addf %27, %1 : vector<4x128xf32>
    %cst_20 = arith.constant 0.000000e+00 : f32
    %29 = vector.broadcast %cst_20 : f32 to vector<4x128xf32>
    %30 = arith.maximumf %28, %29 : vector<4x128xf32>
    %c0_21 = arith.constant 0 : index
    %c0_22 = arith.constant 0 : index
    %c0_23 = arith.constant 0 : index
    %31 = vector.load %arg9[%c0_21, %c0_22, %c0_23] : memref<1x4x128xf32, #tpu.memory_space<vmem>>, vector<1x4x128xf32>
    %32 = vector.shape_cast %31 : vector<1x4x128xf32> to vector<4x128xf32>
    %33 = vector.shape_cast %30 : vector<4x128xf32> to vector<1x4x128xf32>
    tpu.vector_store %arg9[%c0_21, %c0_22, %c0_23], %33 {strides = array<i32>} : memref<1x4x128xf32, #tpu.memory_space<vmem>>, vector<1x4x128xf32>,
    return
  }
  func.func @transform_0(%arg0: i32, %arg1: i32) -> (i32, i32, i32) {
    %c0_i32 = arith.constant 0 : i32
    %c0_i32_0 = arith.constant 0 : i32
    return %arg0, %c0_i32, %arg1 : i32, i32, i32
  }
  func.func @transform_1(%arg0: i32, %arg1: i32) -> (i32, i32, i32) {
    %c0_i32 = arith.constant 0 : i32
    %c0_i32_0 = arith.constant 0 : i32
    return %arg0, %c0_i32, %arg1 : i32, i32, i32
  }
  func.func @transform_2(%arg0: i32, %arg1: i32) -> (i32, i32, i32) {
    %c0_i32 = arith.constant 0 : i32
    %c0_i32_0 = arith.constant 0 : i32
    %c0_i32_1 = arith.constant 0 : i32
    return %arg0, %c0_i32, %c0_i32_0 : i32, i32, i32
  }
  func.func @transform_3(%arg0: i32, %arg1: i32) -> (i32, i32, i32) {
    %c0_i32 = arith.constant 0 : i32
    %c0_i32_0 = arith.constant 0 : i32
    %c0_i32_1 = arith.constant 0 : i32
    return %arg0, %c0_i32, %c0_i32_0 : i32, i32, i32
  }
  func.func @transform_4(%arg0: i32, %arg1: i32) -> (i32, i32) {
    %c0_i32 = arith.constant 0 : i32
    %c0_i32_0 = arith.constant 0 : i32
    %c0_i32_1 = arith.constant 0 : i32
    return %c0_i32, %c0_i32_0 : i32, i32
  }
  func.func @transform_5(%arg0: i32, %arg1: i32) -> (i32, i32) {
    %c0_i32 = arith.constant 0 : i32
    %c0_i32_0 = arith.constant 0 : i32
    %c0_i32_1 = arith.constant 0 : i32
    return %c0_i32, %c0_i32_0 : i32, i32
  }
  func.func @transform_6(%arg0: i32, %arg1: i32) -> (i32, i32) {
    %c0_i32 = arith.constant 0 : i32
    %c0_i32_0 = arith.constant 0 : i32
    %c0_i32_1 = arith.constant 0 : i32
    return %c0_i32, %c0_i32_0 : i32, i32
  }
  func.func @transform_7(%arg0: i32, %arg1: i32) -> (i32, i32, i32) {
    %c0_i32 = arith.constant 0 : i32
    %c0_i32_0 = arith.constant 0 : i32
    return %arg0, %c0_i32, %arg1 : i32, i32, i32
  }
}

</mosaic_0001>

<llo_original>
// kernel: external_attention.3
$region0: #{external_attention.3}
  #allocation0 [shape = 'u32[]', space=smem, size = 0x4, offset = 0x4, fixed_abs, tag = 'smem constant byte address 0x4 - core index']
  #allocation1 [shape = 'u32[144,128]{1,0:T(1,128)}', space=vmem, size = 0x12000, scoped, tag = 'internal scratch']
  %s0 = inlined_call_operand.vmem [shape: f32[2,4,256], index: 0, kind: input, shape index: {}]
  %s1 = inlined_call_operand.vmem [shape: f32[2,64,256], index: 1, kind: input, shape index: {}]
  %s2 = inlined_call_operand.vmem [shape: f32[2,64,1], index: 2, kind: input, shape index: {}]
  %s3 = inlined_call_operand.vmem [shape: f32[2,64,1], index: 3, kind: input, shape index: {}]
  %s4 = inlined_call_operand.vmem [shape: f32[4,64], index: 4, kind: input, shape index: {}]
  %s5 = inlined_call_operand.vmem [shape: f32[4,4], index: 5, kind: input, shape index: {}]
  %s6 = inlined_call_operand.vmem [shape: f32[4,1], index: 6, kind: input, shape index: {}]
  %s7 = inlined_call_operand.vmem [shape: f32[2,4,256], index: 7, kind: output, shape index: {}]
  %s8 = sld [smem:[#allocation0]]
  $region99: #{external_attention.3} parent=0
    _
  %s10 = ssub.s32 1, %s8
  %s11 = scalar_select 0, %s10, %s8
  $region1: #{external_attention.3} parent=0
    #allocation2 [shape = 'u8[65536]{0}', space=vmem, size = 0x10000, scoped, tag = 'input window, operand 1']
    loop: start=0, step=1, limit=6
    $region2: #{external_attention.3} parent=1 // loop_pre_header
      _
    $region3: #{external_attention.3} parent=1 // loop_header
      %s13 = sphi 0, %s17
      %p14 = scmp.ge.s32.totalorder %s13, 6
      %s20 = sphi 0, %s32
      %s21 = sphi 0, %s28
      %s22 = sphi 0, %s20
      %s23 = sphi 0, %s21
      %s24 = sphi 0, %s22
      %s25 = sphi 0, %s23
      %s37 = sphi 0, %s39
      %s40 = sphi 0, %s37
      %s41 = sphi 0, %s40
      %s57 = sphi 0, %s41
      %s65 = sphi 0, %s67
      %s68 = sphi 0, %s65
      %s69 = sphi 0, %s68
      %s85 = sphi 0, %s69
      %s91 = sphi 0, %s93
      %s94 = sphi 0, %s91
      %s95 = sphi 0, %s94
      %s111 = sphi 0, %s95
      %s117 = sphi 0, %s119
      %s120 = sphi 0, %s117
      %s121 = sphi 0, %s120
      %s137 = sphi 0, %s121
      %s141 = sphi 0, %s141
      %s143 = sphi 0, %s141
      %s144 = sphi 0, %s143
      %s158 = sphi 0, %s144
      %s162 = sphi 0, %s162
      %s164 = sphi 0, %s162
      %s165 = sphi 0, %s164
      %s179 = sphi 0, %s165
      %s183 = sphi 0, %s183
      %s185 = sphi 0, %s183
      %s186 = sphi 0, %s185
      %s200 = sphi 0, %s186
      %s208 = sphi 0, %s210
      %s211 = sphi 0, %s208
      %s212 = sphi 0, %s211
      %s228 = sphi 0, %s212
    $region4: #{external_attention.3} parent=1 // loop_header_branch
      %16 = sbr.rel (%p14) target = $region8
    $region5: #{external_attention.3} parent=1 // loop_body
      %s18 = ssub.s32 %s13, 1
      %s19 = ssub.s32 %s13, 2
      %s26 = sadd.s32 1, %s21
      %p27 = scmp.ge.s32.totalorder %s26, 2
      %s28 = scalar_select %p27, 0, %s26
      %s29 = sadd.s32 1, %s20
      %s30 = scalar_select %p27, %s29, %s20
      %p31 = scmp.ge.s32.totalorder %s30, 2
      %s32 = scalar_select %p31, 0, %s30
      %s33 = ssub.s32 %s20, %s32
      %s34 = ssub.s32 %s21, %s28
      %s35 = sor.u32 %s33, %s34
      %p36 = scmp.eq.s32.totalorder %s35, 0
      %s38 = sadd.s32 %s37, 1
      %s39 = scalar_select %p36, %s37, %s38
      %p42 = pneg %p36
      %p43 = scmp.eq.s32.totalorder %s13, 3
      %p44 = por %p42, %p43
      %p45 = scmp.ne.s32.totalorder %s37, %s40
      %p46 = scmp.eq.s32.totalorder %s13, 0
      %p47 = por %p45, %p46
      %p48 = scmp.ne.s32.totalorder %s37, %s40
      %p49 = scmp.eq.s32.totalorder %s18, 3
      %p50 = por %p48, %p49
      %p51 = scmp.ne.s32.totalorder %s40, %s41
      %p52 = scmp.eq.s32.totalorder %s18, 0
      %p53 = por %p51, %p52
      %p54 = scmp.ne.s32.totalorder %s40, %s41
      %p55 = scmp.eq.s32.totalorder %s19, 3
      %p56 = por %p54, %p55
      %p58 = scmp.ne.s32.totalorder %s41, %s57
      %p59 = scmp.eq.s32.totalorder %s19, 0
      %p60 = por %p58, %p59
      %s61 = ssub.s32 %s20, %s32
      %s62 = ssub.s32 %s21, %s28
      %s63 = sor.u32 %s61, %s62
      %p64 = scmp.eq.s32.totalorder %s63, 0
      %s66 = sadd.s32 %s65, 1
      %s67 = scalar_select %p64, %s65, %s66
      %p70 = pneg %p64
      %p71 = scmp.eq.s32.totalorder %s13, 3
      %p72 = por %p70, %p71
      %p73 = scmp.ne.s32.totalorder %s65, %s68
      %p74 = scmp.eq.s32.totalorder %s13, 0
      %p75 = por %p73, %p74
      %p76 = scmp.ne.s32.totalorder %s65, %s68
      %p77 = scmp.eq.s32.totalorder %s18, 3
      %p78 = por %p76, %p77
      %p79 = scmp.ne.s32.totalorder %s68, %s69
      %p80 = scmp.eq.s32.totalorder %s18, 0
      %p81 = por %p79, %p80
      %p82 = scmp.ne.s32.totalorder %s68, %s69
      %p83 = scmp.eq.s32.totalorder %s19, 3
      %p84 = por %p82, %p83
      %p86 = scmp.ne.s32.totalorder %s69, %s85
      %p87 = scmp.eq.s32.totalorder %s19, 0
      %p88 = por %p86, %p87
      %s89 = ssub.s32 %s20, %s32
      %p90 = scmp.eq.s32.totalorder %s89, 0
      %s92 = sadd.s32 %s91, 1
      %s93 = scalar_select %p90, %s91, %s92
      %p96 = pneg %p90
      %p97 = scmp.eq.s32.totalorder %s13, 3
      %p98 = por %p96, %p97
      %p99 = scmp.ne.s32.totalorder %s91, %s94
      %p100 = scmp.eq.s32.totalorder %s13, 0
      %p101 = por %p99, %p100
      %p102 = scmp.ne.s32.totalorder %s91, %s94
      %p103 = scmp.eq.s32.totalorder %s18, 3
      %p104 = por %p102, %p103
      %p105 = scmp.ne.s32.totalorder %s94, %s95
      %p106 = scmp.eq.s32.totalorder %s18, 0
      %p107 = por %p105, %p106
      %p108 = scmp.ne.s32.totalorder %s94, %s95
      %p109 = scmp.eq.s32.totalorder %s19, 3
      %p110 = por %p108, %p109
      %p112 = scmp.ne.s32.totalorder %s95, %s111
      %p113 = scmp.eq.s32.totalorder %s19, 0
      %p114 = por %p112, %p113
      %s115 = ssub.s32 %s20, %s32
      %p116 = scmp.eq.s32.totalorder %s115, 0
      %s118 = sadd.s32 %s117, 1
      %s119 = scalar_select %p116, %s117, %s118
      %p122 = pneg %p116
      %p123 = scmp.eq.s32.totalorder %s13, 3
      %p124 = por %p122, %p123
      %p125 = scmp.ne.s32.totalorder %s117, %s120
      %p126 = scmp.eq.s32.totalorder %s13, 0
      %p127 = por %p125, %p126
      %p128 = scmp.ne.s32.totalorder %s117, %s120
      %p129 = scmp.eq.s32.totalorder %s18, 3
      %p130 = por %p128, %p129
      %p131 = scmp.ne.s32.totalorder %s120, %s121
      %p132 = scmp.eq.s32.totalorder %s18, 0
      %p133 = por %p131, %p132
      %p134 = scmp.ne.s32.totalorder %s120, %s121
      %p135 = scmp.eq.s32.totalorder %s19, 3
      %p136 = por %p134, %p135
      %p138 = scmp.ne.s32.totalorder %s121, %s137
      %p139 = scmp.eq.s32.totalorder %s19, 0
      %p140 = por %p138, %p139
      %s142 = sadd.s32 %s141, 1
      %p145 = scmp.eq.s32.totalorder %s13, 3
      %p146 = scmp.ne.s32.totalorder %s141, %s143
      %p147 = scmp.eq.s32.totalorder %s13, 0
      %p148 = por %p146, %p147
      %p149 = scmp.ne.s32.totalorder %s141, %s143
      %p150 = scmp.eq.s32.totalorder %s18, 3
      %p151 = por %p149, %p150
      %p152 = scmp.ne.s32.totalorder %s143, %s144
      %p153 = scmp.eq.s32.totalorder %s18, 0
      %p154 = por %p152, %p153
      %p155 = scmp.ne.s32.totalorder %s143, %s144
      %p156 = scmp.eq.s32.totalorder %s19, 3
      %p157 = por %p155, %p156
      %p159 = scmp.ne.s32.totalorder %s144, %s158
      %p160 = scmp.eq.s32.totalorder %s19, 0
      %p161 = por %p159, %p160
      %s163 = sadd.s32 %s162, 1
      %p166 = scmp.eq.s32.totalorder %s13, 3
      %p167 = scmp.ne.s32.totalorder %s162, %s164
      %p168 = scmp.eq.s32.totalorder %s13, 0
      %p169 = por %p167, %p168
      %p170 = scmp.ne.s32.totalorder %s162, %s164
      %p171 = scmp.eq.s32.totalorder %s18, 3
      %p172 = por %p170, %p171
      %p173 = scmp.ne.s32.totalorder %s164, %s165
      %p174 = scmp.eq.s32.totalorder %s18, 0
      %p175 = por %p173, %p174
      %p176 = scmp.ne.s32.totalorder %s164, %s165
      %p177 = scmp.eq.s32.totalorder %s19, 3
      %p178 = por %p176, %p177
      %p180 = scmp.ne.s32.totalorder %s165, %s179
      %p181 = scmp.eq.s32.totalorder %s19, 0
      %p182 = por %p180, %p181
      %s184 = sadd.s32 %s183, 1
      %p187 = scmp.eq.s32.totalorder %s13, 3
      %p188 = scmp.ne.s32.totalorder %s183, %s185
      %p189 = scmp.eq.s32.totalorder %s13, 0
      %p190 = por %p188, %p189
      %p191 = scmp.ne.s32.totalorder %s183, %s185
      %p192 = scmp.eq.s32.totalorder %s18, 3
      %p193 = por %p191, %p192
      %p194 = scmp.ne.s32.totalorder %s185, %s186
      %p195 = scmp.eq.s32.totalorder %s18, 0
      %p196 = por %p194, %p195
      %p197 = scmp.ne.s32.totalorder %s185, %s186
      %p198 = scmp.eq.s32.totalorder %s19, 3
      %p199 = por %p197, %p198
      %p201 = scmp.ne.s32.totalorder %s186, %s200
      %p202 = scmp.eq.s32.totalorder %s19, 0
      %p203 = por %p201, %p202
      %s204 = ssub.s32 %s20, %s32
      %s205 = ssub.s32 %s21, %s28
      %s206 = sor.u32 %s204, %s205
      %p207 = scmp.eq.s32.totalorder %s206, 0
      %s209 = sadd.s32 %s208, 1
      %s210 = scalar_select %p207, %s208, %s209
      %p213 = pneg %p207
      %p214 = scmp.eq.s32.totalorder %s13, 3
      %p215 = por %p213, %p214
      %p216 = scmp.ne.s32.totalorder %s208, %s211
      %p217 = scmp.eq.s32.totalorder %s13, 0
      %p218 = por %p216, %p217
      %p219 = scmp.ne.s32.totalorder %s208, %s211
      %p220 = scmp.eq.s32.totalorder %s18, 3
      %p221 = por %p219, %p220
      %p222 = scmp.ne.s32.totalorder %s211, %s212
      %p223 = scmp.eq.s32.totalorder %s18, 0
      %p224 = por %p222, %p223
      %p225 = scmp.ne.s32.totalorder %s211, %s212
      %p226 = scmp.eq.s32.totalorder %s19, 3
      %p227 = por %p225, %p226
      %p229 = scmp.ne.s32.totalorder %s212, %s228
      %p230 = scmp.eq.s32.totalorder %s19, 0
      %p231 = por %p229, %p230
      %p232 = scmp.le.s32.totalorder 1, %s13
      %p233 = scmp.lt.s32.totalorder %s13, 5
      %p234 = pnand %p232, %p233
      %p235 = pneg %p234
      // Predicated region
      $region9: #{external_attention.3} parent=5 // pred_check
        _
      $region10: #{external_attention.3} parent=5 // pred_check_branch
        %237 = sbr.rel (%p234) target = $region12
      $region11: #{external_attention.3} parent=5 // pred_region
        %s238 = ssub.s32 %s13, 1
        // Predicated region
        $region13: #{external_attention.3} parent=11 // pred_check
          %p239 = pneg %p154
        $region14: #{external_attention.3} parent=11 // pred_check_branch
          %241 = sbr.rel (%p239) target = $region16
        $region15: #{external_attention.3} parent=11 // pred_region
          _
        $region16: #{external_attention.3} parent=11 // pred_fallthru
          _
        // Predicated region
        $region17: #{external_attention.3} parent=11 // pred_check
          %p242 = pneg %p175
        $region18: #{external_attention.3} parent=11 // pred_check_branch
          %244 = sbr.rel (%p242) target = $region20
        $region19: #{external_attention.3} parent=11 // pred_region
          _
        $region20: #{external_attention.3} parent=11 // pred_fallthru
          _
        // Predicated region
        $region21: #{external_attention.3} parent=11 // pred_check
          %p245 = pneg %p196
        $region22: #{external_attention.3} parent=11 // pred_check_branch
          %247 = sbr.rel (%p245) target = $region24
        $region23: #{external_attention.3} parent=11 // pred_region
          _
        $region24: #{external_attention.3} parent=11 // pred_fallthru
          _
      $region12: #{external_attention.3} parent=5 // pred_fallthru
        _
      %p248 = scmp.lt.s32.totalorder %s13, 4
      // Predicated region
      $region25: #{external_attention.3} parent=5 // pred_check
        %p249 = pneg %p248
      $region26: #{external_attention.3} parent=5 // pred_check_branch
        %251 = sbr.rel (%p249) target = $region28
      $region27: #{external_attention.3} parent=5 // pred_region
        // Predicated region
        $region29: #{external_attention.3} parent=27 // pred_check
          %p252 = pneg %p47
        $region30: #{external_attention.3} parent=27 // pred_check_branch
          %254 = sbr.rel (%p252) target = $region32
        $region31: #{external_attention.3} parent=27 // pred_region
          %p255 = scmp.lt.s32.totalorder %s20, 1
          %s256 = scalar_select %p255, %s20, 1
          %p257 = scmp.lt.s32.totalorder %s21, 1
          %s258 = scalar_select %p257, %s21, 1
          %s259 = smul.addr %s256, 2
          %s260 = sadd.s32 %s258, %s259
          %s261 = smul.addr %s260, 4
          %s262 = scalar_lea.vmem %s0, %s261
        $region32: #{external_attention.3} parent=27 // pred_fallthru
          _
        // Predicated region
        $region33: #{external_attention.3} parent=27 // pred_check
          %p263 = pneg %p75
        $region34: #{external_attention.3} parent=27 // pred_check_branch
          %265 = sbr.rel (%p263) target = $region36
        $region35: #{external_attention.3} parent=27 // pred_region
          %s266 = sand.u32 %s65, 1
          %s267 = sand.u32 %s65, 1
          %s268 = smul.addr %s267, 64
          %s269 = scalar_lea.vmem [#allocation2], %s268
          %s270 = smul.addr %s20, 16
          %s271 = sadd.s32 %s21, %s270
          %s272 = smul.addr %s271, 8
          %s273 = scalar_lea.vmem %s1, %s272
          // Predicated region
          $region37: #{external_attention.3} parent=35 // pred_check
            _
          $region38: #{external_attention.3} parent=35 // pred_check_branch
            %275 = sbr.rel (0) target = $region40
          $region39: #{external_attention.3} parent=35 // pred_region
            // Predicated region
            $region41: #{external_attention.3} parent=39 // pred_check
              _
            $region42: #{external_attention.3} parent=39 // pred_check_branch
              %277 = sbr.rel (0) target = $region44
            $region43: #{external_attention.3} parent=39 // pred_region
              // Predicated region
              $region56: #{external_attention.3} parent=43 // pred_check
                _
              $region57: #{external_attention.3} parent=43 // pred_check_branch
                %306 = sbr.rel (0) target = $region59
              $region58: #{external_attention.3} parent=43 // pred_region
                loop: start=0, step=1, limit=1
                $region60: #{external_attention.3} parent=58 // loop_pre_header
                  _
                $region61: #{external_attention.3} parent=58 // loop_header
                  %s308 = sphi 0, %s312
                  %p309 = scmp.ge.s32.totalorder %s308, 1
                  %s313 = sphi %s273, %s273
                  %s314 = sphi %s269, %s269
                $region62: #{external_attention.3} parent=58 // loop_header_branch
                  %311 = sbr.rel (%p309) target = $region66
                $region63: #{external_attention.3} parent=58 // loop_body
                  %v315 = vld [vmem:[%s313] sm:$0xff]
                  %316 = vst [vmem:[%s314] sm:$0xff] %v315
                  %v317 = vld [vmem:[%s313 + $0x10] sm:$0xff]
                  %318 = vst [vmem:[%s314 + $0x8] sm:$0xff] %v317
                  %v319 = vld [vmem:[%s313 + $0x20] sm:$0xff]
                  %320 = vst [vmem:[%s314 + $0x10] sm:$0xff] %v319
                  %v321 = vld [vmem:[%s313 + $0x30] sm:$0xff]
                  %322 = vst [vmem:[%s314 + $0x18] sm:$0xff] %v321
                  %v323 = vld [vmem:[%s313 + $0x40] sm:$0xff]
                  %324 = vst [vmem:[%s314 + $0x20] sm:$0xff] %v323
                  %v325 = vld [vmem:[%s313 + $0x50] sm:$0xff]
                  %326 = vst [vmem:[%s314 + $0x28] sm:$0xff] %v325
                  %v327 = vld [vmem:[%s313 + $0x60] sm:$0xff]
                  %328 = vst [vmem:[%s314 + $0x30] sm:$0xff] %v327
                  %v329 = vld [vmem:[%s313 + $0x70] sm:$0xff]
                  %330 = vst [vmem:[%s314 + $0x38] sm:$0xff] %v329
                $region64: #{external_attention.3} parent=58 // loop_footer
                  %s312 = sadd.s32 1, %s308
                $region65: #{external_attention.3} parent=58 // loop_footer_branch
                  %307 = sbr.rel target = $region61
                $region66: #{external_attention.3} parent=58 // loop_exit
                  _
              $region59: #{external_attention.3} parent=43 // pred_fallthru
                _
              // Predicated region
              $region67: #{external_attention.3} parent=43 // pred_check
                _
              $region68: #{external_attention.3} parent=43 // pred_check_branch
                %332 = sbr.rel target = $region70
              $region69: #{external_attention.3} parent=43 // pred_region
                _
              $region70: #{external_attention.3} parent=43 // pred_fallthru
                _
            $region44: #{external_attention.3} parent=39 // pred_fallthru
              _
            // Predicated region
            $region45: #{external_attention.3} parent=39 // pred_check
              _
            $region46: #{external_attention.3} parent=39 // pred_check_branch
              %279 = sbr.rel target = $region48
            $region47: #{external_attention.3} parent=39 // pred_region
              loop: start=0, step=1, limit=1
              $region49: #{external_attention.3} parent=47 // loop_pre_header
                _
              $region50: #{external_attention.3} parent=47 // loop_header
                %s282 = sphi 0, %s286
                %p283 = scmp.ge.s32.totalorder %s282, 1
                %s287 = sphi %s273, %s273
                %s288 = sphi %s269, %s269
              $region51: #{external_attention.3} parent=47 // loop_header_branch
                %285 = sbr.rel (%p283) target = $region55
              $region52: #{external_attention.3} parent=47 // loop_body
                %v289 = vld [vmem:[%s287] sm:$0xff]
                %290 = vst [vmem:[%s288] sm:$0xff] %v289
                %v291 = vld [vmem:[%s287 + $0x10] sm:$0xff]
                %292 = vst [vmem:[%s288 + $0x8] sm:$0xff] %v291
                %v293 = vld [vmem:[%s287 + $0x20] sm:$0xff]
                %294 = vst [vmem:[%s288 + $0x10] sm:$0xff] %v293
                %v295 = vld [vmem:[%s287 + $0x30] sm:$0xff]
                %296 = vst [vmem:[%s288 + $0x18] sm:$0xff] %v295
                %v297 = vld [vmem:[%s287 + $0x40] sm:$0xff]
                %298 = vst [vmem:[%s288 + $0x20] sm:$0xff] %v297
                %v299 = vld [vmem:[%s287 + $0x50] sm:$0xff]
                %300 = vst [vmem:[%s288 + $0x28] sm:$0xff] %v299
                %v301 = vld [vmem:[%s287 + $0x60] sm:$0xff]
                %302 = vst [vmem:[%s288 + $0x30] sm:$0xff] %v301
                %v303 = vld [vmem:[%s287 + $0x70] sm:$0xff]
                %304 = vst [vmem:[%s288 + $0x38] sm:$0xff] %v303
              $region53: #{external_attention.3} parent=47 // loop_footer
                %s286 = sadd.s32 1, %s282
              $region54: #{external_attention.3} parent=47 // loop_footer_branch
                %281 = sbr.rel target = $region50
              $region55: #{external_attention.3} parent=47 // loop_exit
                _
            $region48: #{external_attention.3} parent=39 // pred_fallthru
              _
          $region40: #{external_attention.3} parent=35 // pred_fallthru
            _
          %333 = vnop
        $region36: #{external_attention.3} parent=27 // pred_fallthru
          _
        // Predicated region
        $region71: #{external_attention.3} parent=27 // pred_check
          %p334 = pneg %p101
        $region72: #{external_attention.3} parent=27 // pred_check_branch
          %336 = sbr.rel (%p334) target = $region74
        $region73: #{external_attention.3} parent=27 // pred_region
          %p337 = scmp.lt.s32.totalorder %s20, 1
          %s338 = scalar_select %p337, %s20, 1
          %s339 = smul.addr %s338, 8
          %s340 = smul.addr %s339, 8
          %s341 = scalar_lea.vmem %s2, %s340
        $region74: #{external_attention.3} parent=27 // pred_fallthru
          _
        // Predicated region
        $region75: #{external_attention.3} parent=27 // pred_check
          %p342 = pneg %p127
        $region76: #{external_attention.3} parent=27 // pred_check_branch
          %344 = sbr.rel (%p342) target = $region78
        $region77: #{external_attention.3} parent=27 // pred_region
          %p345 = scmp.lt.s32.totalorder %s20, 1
          %s346 = scalar_select %p345, %s20, 1
          %s347 = smul.addr %s346, 8
          %s348 = smul.addr %s347, 8
          %s349 = scalar_lea.vmem %s3, %s348
        $region78: #{external_attention.3} parent=27 // pred_fallthru
          _
      $region28: #{external_attention.3} parent=5 // pred_fallthru
        _
      %p350 = scmp.le.s32.totalorder 1, %s13
      %p351 = scmp.lt.s32.totalorder %s13, 5
      %p352 = pnand %p350, %p351
      %p353 = pneg %p352
      // Predicated region
      $region79: #{external_attention.3} parent=5 // pred_check
        _
      $region80: #{external_attention.3} parent=5 // pred_check_branch
        %355 = sbr.rel (%p352) target = $region82
      $region81: #{external_attention.3} parent=5 // pred_region
        %s356 = ssub.s32 %s13, 1
        %s357 = sand.u32 %s68, 1
        %s358 = sand.u32 %s68, 1
        %s359 = smul.addr %s358, 64
        %s360 = scalar_lea.vmem [#allocation2], %s359
        // Predicated region
        $region83: #{external_attention.3} parent=81 // pred_check
          %p361 = pneg %p81
        $region84: #{external_attention.3} parent=81 // pred_check_branch
          %363 = sbr.rel (%p361) target = $region86
        $region85: #{external_attention.3} parent=81 // pred_region
          _
        $region86: #{external_attention.3} parent=81 // pred_fallthru
          _
        %p364 = scmp.lt.s32.totalorder %s22, 1
        %s365 = scalar_select %p364, %s22, 1
        %p366 = scmp.lt.s32.totalorder %s23, 1
        %s367 = scalar_select %p366, %s23, 1
        %s368 = smul.addr %s365, 2
        %s369 = sadd.s32 %s367, %s368
        %s370 = smul.addr %s369, 4
        %s371 = scalar_lea.vmem %s0, %s370
        %p372 = pneg %p53
        %p373 = pneg %p50
        %s374 = sand.u32 %s68, 1
        %s375 = sand.u32 %s68, 1
        %s376 = smul.addr %s375, 64
        %s377 = scalar_lea.vmem [#allocation2], %s376
        %p378 = pneg %p81
        %p379 = pneg %p78
        %p380 = scmp.lt.s32.totalorder %s22, 1
        %s381 = scalar_select %p380, %s22, 1
        %s382 = smul.addr %s381, 8
        %s383 = smul.addr %s382, 8
        %s384 = scalar_lea.vmem %s2, %s383
        %p385 = pneg %p107
        %p386 = pneg %p104
        %p387 = scmp.lt.s32.totalorder %s22, 1
        %s388 = scalar_select %p387, %s22, 1
        %s389 = smul.addr %s388, 8
        %s390 = smul.addr %s389, 8
        %s391 = scalar_lea.vmem %s3, %s390
        %p392 = pneg %p133
        %p393 = pneg %p130
        %p394 = pneg %p154
        %p395 = pneg %p151
        %p396 = pneg %p175
        %p397 = pneg %p172
        %p398 = pneg %p196
        %p399 = pneg %p193
        %p400 = pneg %p224
        %p401 = pneg %p221
        %p402 = scmp.lt.s32.totalorder %s22, 1
        %s403 = scalar_select %p402, %s22, 1
        %p404 = scmp.lt.s32.totalorder %s23, 1
        %s405 = scalar_select %p404, %s23, 1
        %s406 = smul.addr %s403, 2
        %s407 = sadd.s32 %s405, %s406
        %s408 = smul.addr %s407, 4
        %s409 = scalar_lea.vmem %s7, %s408
        %p410 = scmp.lt.s32.totalorder %s22, 1
        %s411 = scalar_select %p410, %s22, 1
        %p412 = scmp.lt.s32.totalorder %s23, 1
        %s413 = scalar_select %p412, %s23, 1
        %s414 = smul.addr %s411, 2
        %s415 = sadd.s32 %s413, %s414
        %s416 = smul.addr %s415, 4
        %s417 = scalar_lea.vmem %s0, %s416
        %p418 = scmp.lt.s32.totalorder %s22, 1
        %s419 = scalar_select %p418, %s22, 1
        %s420 = smul.addr %s419, 8
        %s421 = smul.addr %s420, 8
        %s422 = scalar_lea.vmem %s2, %s421
        %p423 = scmp.lt.s32.totalorder %s22, 1
        %s424 = scalar_select %p423, %s22, 1
        %s425 = smul.addr %s424, 8
        %s426 = smul.addr %s425, 8
        %s427 = scalar_lea.vmem %s3, %s426
        %p428 = scmp.lt.s32.totalorder %s22, 1
        %s429 = scalar_select %p428, %s22, 1
        %p430 = scmp.lt.s32.totalorder %s23, 1
        %s431 = scalar_select %p430, %s23, 1
        %s432 = smul.addr %s429, 2
        %s433 = sadd.s32 %s431, %s432
        %s434 = smul.addr %s433, 4
        %s435 = scalar_lea.vmem %s7, %s434
        %v436 = vld [vmem:[%s417] sm:$0xf]
        %v437 = vld [vmem:[%s360] sm:$0xff]
        %v438 = vld [vmem:[%s360 + $0x8] sm:$0xff]
        %v439 = vld [vmem:[%s360 + $0x10] sm:$0xff]
        %v440 = vld [vmem:[%s360 + $0x18] sm:$0xff]
        %v441 = vld [vmem:[%s360 + $0x20] sm:$0xff]
        %v442 = vld [vmem:[%s360 + $0x28] sm:$0xff]
        %v443 = vld [vmem:[%s360 + $0x30] sm:$0xff]
        %v444 = vld [vmem:[%s360 + $0x38] sm:$0xff]
        %v445 = vld [vmem:[%s422] sm:$0xff]
        %v446 = vld [vmem:[%s422 + $0x8] sm:$0xff]
        %v447 = vld [vmem:[%s422 + $0x10] sm:$0xff]
        %v448 = vld [vmem:[%s422 + $0x18] sm:$0xff]
        %v449 = vld [vmem:[%s422 + $0x20] sm:$0xff]
        %v450 = vld [vmem:[%s422 + $0x28] sm:$0xff]
        %v451 = vld [vmem:[%s422 + $0x30] sm:$0xff]
        %v452 = vld [vmem:[%s422 + $0x38] sm:$0xff]
        %454 = vset.pattern.permute.xlu0 0
        %455 = vperm.xlu0 %454, %v445
        %v456 = vpop.permute.xlu0 %455
        %459 = vset.pattern.permute.xlu0 0
        %460 = vperm.xlu0 %459, %v446
        %v461 = vpop.permute.xlu0 %460
        %464 = vset.pattern.permute.xlu0 0
        %465 = vperm.xlu0 %464, %v447
        %v466 = vpop.permute.xlu0 %465
        %469 = vset.pattern.permute.xlu0 0
        %470 = vperm.xlu0 %469, %v448
        %v471 = vpop.permute.xlu0 %470
        %474 = vset.pattern.permute.xlu0 0
        %475 = vperm.xlu0 %474, %v449
        %v476 = vpop.permute.xlu0 %475
        %479 = vset.pattern.permute.xlu0 0
        %480 = vperm.xlu0 %479, %v450
        %v481 = vpop.permute.xlu0 %480
        %484 = vset.pattern.permute.xlu0 0
        %485 = vperm.xlu0 %484, %v451
        %v486 = vpop.permute.xlu0 %485
        %489 = vset.pattern.permute.xlu0 0
        %490 = vperm.xlu0 %489, %v452
        %v491 = vpop.permute.xlu0 %490
        %v493 = vsub.f32 %v437, %v456
        %v494 = vsub.f32 %v438, %v461
        %v495 = vsub.f32 %v439, %v466
        %v496 = vsub.f32 %v440, %v471
        %v497 = vsub.f32 %v441, %v476
        %v498 = vsub.f32 %v442, %v481
        %v499 = vsub.f32 %v443, %v486
        %v500 = vsub.f32 %v444, %v491
        %v501 = vmul.f32 %v493, 1.442695
        %v502 = vpow.pop %v501
        %v503 = vmul.f32 %v494, 1.442695
        %v504 = vpow.pop %v503
        %v505 = vmul.f32 %v495, 1.442695
        %v506 = vpow.pop %v505
        %v507 = vmul.f32 %v496, 1.442695
        %v508 = vpow.pop %v507
        %v509 = vmul.f32 %v497, 1.442695
        %v510 = vpow.pop %v509
        %v511 = vmul.f32 %v498, 1.442695
        %v512 = vpow.pop %v511
        %v513 = vmul.f32 %v499, 1.442695
        %v514 = vpow.pop %v513
        %v515 = vmul.f32 %v500, 1.442695
        %v516 = vpow.pop %v515
        %v517 = vld [vmem:[%s427] sm:$0xff]
        %v518 = vld [vmem:[%s427 + $0x8] sm:$0xff]
        %v519 = vld [vmem:[%s427 + $0x10] sm:$0xff]
        %v520 = vld [vmem:[%s427 + $0x18] sm:$0xff]
        %v521 = vld [vmem:[%s427 + $0x20] sm:$0xff]
        %v522 = vld [vmem:[%s427 + $0x28] sm:$0xff]
        %v523 = vld [vmem:[%s427 + $0x30] sm:$0xff]
        %v524 = vld [vmem:[%s427 + $0x38] sm:$0xff]
        %v525 = vrcp.pop %v517
        %v526 = vrcp.pop %v518
        %v527 = vrcp.pop %v519
        %v528 = vrcp.pop %v520
        %v529 = vrcp.pop %v521
        %v530 = vrcp.pop %v522
        %v531 = vrcp.pop %v523
        %v532 = vrcp.pop %v524
        %534 = vset.pattern.permute.xlu0 0
        %535 = vperm.xlu0 %534, %v525
        %v536 = vpop.permute.xlu0 %535
        %539 = vset.pattern.permute.xlu0 0
        %540 = vperm.xlu0 %539, %v526
        %v541 = vpop.permute.xlu0 %540
        %544 = vset.pattern.permute.xlu0 0
        %545 = vperm.xlu0 %544, %v527
        %v546 = vpop.permute.xlu0 %545
        %549 = vset.pattern.permute.xlu0 0
        %550 = vperm.xlu0 %549, %v528
        %v551 = vpop.permute.xlu0 %550
        %554 = vset.pattern.permute.xlu0 0
        %555 = vperm.xlu0 %554, %v529
        %v556 = vpop.permute.xlu0 %555
        %559 = vset.pattern.permute.xlu0 0
        %560 = vperm.xlu0 %559, %v530
        %v561 = vpop.permute.xlu0 %560
        %564 = vset.pattern.permute.xlu0 0
        %565 = vperm.xlu0 %564, %v531
        %v566 = vpop.permute.xlu0 %565
        %569 = vset.pattern.permute.xlu0 0
        %570 = vperm.xlu0 %569, %v532
        %v571 = vpop.permute.xlu0 %570
        %v573 = vmul.f32 %v502, %v536
        %v574 = vmul.f32 %v504, %v541
        %v575 = vmul.f32 %v506, %v546
        %v576 = vmul.f32 %v508, %v551
        %v577 = vmul.f32 %v510, %v556
        %v578 = vmul.f32 %v512, %v561
        %v579 = vmul.f32 %v514, %v566
        %v580 = vmul.f32 %v516, %v571
        %v581 = vadd.f32 %v573, %v574
        %v582 = vadd.f32 %v581, %v575
        %v583 = vadd.f32 %v582, %v576
        %v584 = vadd.f32 %v583, %v577
        %v585 = vadd.f32 %v584, %v578
        %v586 = vadd.f32 %v585, %v579
        %v587 = vadd.f32 %v586, %v580
        %v588 = vrot.slane %v587, 4
        %v589 = vadd.f32 %v587, %v588
        %v590 = vrot.slane %v589, 2
        %v591 = vadd.f32 %v589, %v590
        %v592 = vrot.slane %v591, 1
        %v593 = vadd.f32 %v591, %v592
        %v594 = vadd.f32 %v593, 1e-09
        %v595 = vrcp.pop %v594
        %v596 = vmul.f32 %v573, %v595
        %v597 = vmul.f32 %v574, %v595
        %v598 = vmul.f32 %v575, %v595
        %v599 = vmul.f32 %v576, %v595
        %v600 = vmul.f32 %v577, %v595
        %v601 = vmul.f32 %v578, %v595
        %v602 = vmul.f32 %v579, %v595
        %v603 = vmul.f32 %v580, %v595
        %v604 = vld [vmem:[%s4] sm:$0xf]
        %vm605 = vcmask 523264
        %v607 = vsel %vm605, %v604, 0
        %609 = vmatprep.subr.mxu0 0.0
        %610 = vmatpush1.msra.mxu0 %v596
        %611 = vmatprep.subr.mxu0 0.0
        %612 = vmatpush1.msra.mxu0 %v597
        %613 = vmatprep.subr.mxu0 0.0
        %614 = vmatpush1.msra.mxu0 %v598
        %615 = vmatprep.subr.mxu0 0.0
        %616 = vmatpush1.msra.mxu0 %v599
        %617 = vmatprep.subr.mxu0 0.0
        %618 = vmatpush1.msra.mxu0 %v600
        %619 = vmatprep.subr.mxu0 0.0
        %620 = vmatpush1.msra.mxu0 %v601
        %621 = vmatprep.subr.mxu0 0.0
        %622 = vmatpush1.msra.mxu0 %v602
        %623 = vmatprep.subr.mxu0 0.0
        %624 = vmatpush1.msra.mxu0 %v603
        %625 = vmatprep.subr.mxu0 0.0
        %626 = vmatpush1.msra.mxu0 0.0
        %627 = vmatprep.subr.mxu0 0.0
        %628 = vmatpush1.msra.mxu0 0.0
        %629 = vmatprep.subr.mxu0 0.0
        %630 = vmatpush1.msra.mxu0 0.0
        %631 = vmatprep.subr.mxu0 0.0
        %632 = vmatpush1.msra.mxu0 0.0
        %633 = vmatprep.subr.mxu0 0.0
        %634 = vmatpush1.msra.mxu0 0.0
        %635 = vmatprep.subr.mxu0 0.0
        %636 = vmatpush1.msra.mxu0 0.0
        %637 = vmatprep.subr.mxu0 0.0
        %638 = vmatpush1.msra.mxu0 0.0
        %639 = vmatprep.subr.mxu0 0.0
        %640 = vmatpush1.msra.mxu0 0.0
        %641 = vmatprep.subr.mxu0 0.0
        %642 = vmatpush1.msra.mxu0 0.0
        %643 = vmatprep.subr.mxu0 0.0
        %644 = vmatpush1.msra.mxu0 0.0
        %645 = vmatprep.subr.mxu0 0.0
        %646 = vmatpush1.msra.mxu0 0.0
        %647 = vmatprep.subr.mxu0 0.0
        %648 = vmatpush1.msra.mxu0 0.0
        %649 = vmatprep.subr.mxu0 0.0
        %650 = vmatpush1.msra.mxu0 0.0
        %651 = vmatprep.subr.mxu0 0.0
        %652 = vmatpush1.msra.mxu0 0.0
        %653 = vmatprep.subr.mxu0 0.0
        %654 = vmatpush1.msra.mxu0 0.0
        %655 = vmatprep.subr.mxu0 0.0
        %656 = vmatpush1.msra.mxu0 0.0
        %657 = vmatprep.subr.mxu0 0.0
        %658 = vmatpush1.msra.mxu0 0.0
        %659 = vmatprep.subr.mxu0 0.0
        %660 = vmatpush1.msra.mxu0 0.0
        %661 = vmatprep.subr.mxu0 0.0
        %662 = vmatpush1.msra.mxu0 0.0
        %663 = vmatprep.subr.mxu0 0.0
        %664 = vmatpush1.msra.mxu0 0.0
        %665 = vmatprep.subr.mxu0 0.0
        %666 = vmatpush1.msra.mxu0 0.0
        %667 = vmatprep.subr.mxu0 0.0
        %668 = vmatpush1.msra.mxu0 0.0
        %669 = vmatprep.subr.mxu0 0.0
        %670 = vmatpush1.msra.mxu0 0.0
        %671 = vmatprep.subr.mxu0 0.0
        %672 = vmatpush1.msra.mxu0 0.0
        %673 = vmatprep.mubr.f32.mxu0 0.0
        %674 = vmatmul.mubr.f32.gmra.mrb[0].mxu0 %v607
        %v675 = vpop.f32.mrb[0].mxu0
        %v676 = vadd.f32 0.0, %v675
        %v677 = vpop.f32.mrb[0].mxu0
        %678 = vdwg.mxu0
        %v679 = vld [vmem:[%s5] sm:$0xf]
        %v680 = vld [vmem:[%s6] sm:$0xf]
        %682 = vset.pattern.permute.xlu0 0
        %683 = vperm.xlu0 %682, %v680
        %v684 = vpop.permute.xlu0 %683
        %vm686 = vcmask 31744
        %v688 = vsel %vm686, %v679, 0
        %vm690 = vcmask 1043456
        %v692 = vsel %vm690, %v676, 0
        %694 = vmatprep.subr.mxu0 0.0
        %695 = vmatpush1.msra.mxu0 %v692
        %696 = vmatprep.subr.mxu0 0.0
        %697 = vmatpush1.msra.mxu0 0.0
        %698 = vmatprep.subr.mxu0 0.0
        %699 = vmatpush1.msra.mxu0 0.0
        %700 = vmatprep.subr.mxu0 0.0
        %701 = vmatpush1.msra.mxu0 0.0
        %702 = vmatprep.subr.mxu0 0.0
        %703 = vmatpush1.msra.mxu0 0.0
        %704 = vmatprep.subr.mxu0 0.0
        %705 = vmatpush1.msra.mxu0 0.0
        %706 = vmatprep.subr.mxu0 0.0
        %707 = vmatpush1.msra.mxu0 0.0
        %708 = vmatprep.subr.mxu0 0.0
        %709 = vmatpush1.msra.mxu0 0.0
        %710 = vmatprep.subr.mxu0 0.0
        %711 = vmatpush1.msra.mxu0 0.0
        %712 = vmatprep.subr.mxu0 0.0
        %713 = vmatpush1.msra.mxu0 0.0
        %714 = vmatprep.subr.mxu0 0.0
        %715 = vmatpush1.msra.mxu0 0.0
        %716 = vmatprep.subr.mxu0 0.0
        %717 = vmatpush1.msra.mxu0 0.0
        %718 = vmatprep.subr.mxu0 0.0
        %719 = vmatpush1.msra.mxu0 0.0
        %720 = vmatprep.subr.mxu0 0.0
        %721 = vmatpush1.msra.mxu0 0.0
        %722 = vmatprep.subr.mxu0 0.0
        %723 = vmatpush1.msra.mxu0 0.0
        %724 = vmatprep.subr.mxu0 0.0
        %725 = vmatpush1.msra.mxu0 0.0
        %726 = vmatprep.subr.mxu0 0.0
        %727 = vmatpush1.msra.mxu0 0.0
        %728 = vmatprep.subr.mxu0 0.0
        %729 = vmatpush1.msra.mxu0 0.0
        %730 = vmatprep.subr.mxu0 0.0
        %731 = vmatpush1.msra.mxu0 0.0
        %732 = vmatprep.subr.mxu0 0.0
        %733 = vmatpush1.msra.mxu0 0.0
        %734 = vmatprep.subr.mxu0 0.0
        %735 = vmatpush1.msra.mxu0 0.0
        %736 = vmatprep.subr.mxu0 0.0
        %737 = vmatpush1.msra.mxu0 0.0
        %738 = vmatprep.subr.mxu0 0.0
        %739 = vmatpush1.msra.mxu0 0.0
        %740 = vmatprep.subr.mxu0 0.0
        %741 = vmatpush1.msra.mxu0 0.0
        %742 = vmatprep.subr.mxu0 0.0
        %743 = vmatpush1.msra.mxu0 0.0
        %744 = vmatprep.subr.mxu0 0.0
        %745 = vmatpush1.msra.mxu0 0.0
        %746 = vmatprep.subr.mxu0 0.0
        %747 = vmatpush1.msra.mxu0 0.0
        %748 = vmatprep.subr.mxu0 0.0
        %749 = vmatpush1.msra.mxu0 0.0
        %750 = vmatprep.subr.mxu0 0.0
        %751 = vmatpush1.msra.mxu0 0.0
        %752 = vmatprep.subr.mxu0 0.0
        %753 = vmatpush1.msra.mxu0 0.0
        %754 = vmatprep.subr.mxu0 0.0
        %755 = vmatpush1.msra.mxu0 0.0
        %756 = vmatprep.subr.mxu0 0.0
        %757 = vmatpush1.msra.mxu0 0.0
        %758 = vmatprep.mubr.f32.mxu0 0.0
        %759 = vmatmul.mubr.f32.gmra.mrb[0].mxu0 %v688
        %v760 = vpop.f32.mrb[0].mxu0
        %v761 = vadd.f32 %v684, %v760
        %v762 = vpop.f32.mrb[0].mxu0
        %763 = vdwg.mxu0
        %v764 = vadd.f32 %v761, %v436
        %v765 = vmax.f32 %v764, 0.0
        %766 = vst [vmem:[%s435] sm:$0xf] %v765
        %p767 = scmp.lt.s32.totalorder %s22, 1
        %s768 = scalar_select %p767, %s22, 1
        %p769 = scmp.lt.s32.totalorder %s23, 1
        %s770 = scalar_select %p769, %s23, 1
        %s771 = smul.addr %s768, 2
        %s772 = sadd.s32 %s770, %s771
        %s773 = smul.addr %s772, 4
        %s774 = scalar_lea.vmem %s7, %s773
        // Predicated region
        $region87: #{external_attention.3} parent=81 // pred_check
          %p775 = pneg %p221
        $region88: #{external_attention.3} parent=81 // pred_check_branch
          %777 = sbr.rel (%p775) target = $region90
        $region89: #{external_attention.3} parent=81 // pred_region
          _
        $region90: #{external_attention.3} parent=81 // pred_fallthru
          _
      $region82: #{external_attention.3} parent=5 // pred_fallthru
        _
      %p778 = scmp.le.s32.totalorder 2, %s13
      // Predicated region
      $region91: #{external_attention.3} parent=5 // pred_check
        %p779 = pneg %p778
      $region92: #{external_attention.3} parent=5 // pred_check_branch
        %781 = sbr.rel (%p779) target = $region94
      $region93: #{external_attention.3} parent=5 // pred_region
        %s782 = ssub.s32 %s13, 2
        // Predicated region
        $region95: #{external_attention.3} parent=93 // pred_check
          %p783 = pneg %p227
        $region96: #{external_attention.3} parent=93 // pred_check_branch
          %785 = sbr.rel (%p783) target = $region98
        $region97: #{external_attention.3} parent=93 // pred_region
          %p786 = scmp.lt.s32.totalorder %s24, 1
          %s787 = scalar_select %p786, %s24, 1
          %p788 = scmp.lt.s32.totalorder %s25, 1
          %s789 = scalar_select %p788, %s25, 1
          %s790 = smul.addr %s787, 2
          %s791 = sadd.s32 %s789, %s790
          %s792 = smul.addr %s791, 4
          %s793 = scalar_lea.vmem %s7, %s792
        $region98: #{external_attention.3} parent=93 // pred_fallthru
          _
      $region94: #{external_attention.3} parent=5 // pred_fallthru
        _
    $region6: #{external_attention.3} parent=1 // loop_footer
      %s17 = sadd.s32 1, %s13
    $region7: #{external_attention.3} parent=1 // loop_footer_branch
      %12 = sbr.rel target = $region3
    $region8: #{external_attention.3} parent=1 // loop_exit
      _

// kernel: external_attention.2
$region0: #{external_attention.2}
  #allocation0 [shape = 'u32[]', space=smem, size = 0x4, offset = 0x4, fixed_abs, tag = 'smem constant byte address 0x4 - core index']
  #allocation1 [shape = 'u32[144,128]{1,0:T(1,128)}', space=vmem, size = 0x12000, scoped, tag = 'internal scratch']
  #allocation2 [shape = 'f32[64,1]{1,0:T(8,128)}', space=vmem, size = 0x8000, scoped, tag = 'scratch operand']
  #allocation3 [shape = 'f32[64,1]{1,0:T(8,128)}', space=vmem, size = 0x8000, scoped, tag = 'scratch operand']
  %s0 = inlined_call_operand.vmem [shape: f32[2,4,256], index: 0, kind: input, shape index: {}]
  %s1 = inlined_call_operand.vmem [shape: f32[4,4], index: 1, kind: input, shape index: {}]
  %s2 = inlined_call_operand.vmem [shape: f32[4,1], index: 2, kind: input, shape index: {}]
  %s3 = inlined_call_operand.vmem [shape: f32[64,4], index: 3, kind: input, shape index: {}]
  %s4 = inlined_call_operand.vmem [shape: f32[2,64,256], index: 4, kind: output, shape index: {0}]
  %s5 = inlined_call_operand.vmem [shape: f32[2,64,1], index: 5, kind: output, shape index: {1}]
  %s6 = inlined_call_operand.vmem [shape: f32[2,64,1], index: 6, kind: output, shape index: {2}]
  %7 = xla_tuple %s4, %s5, %s6
  %s8 = sld [smem:[#allocation0]]
  $region107: #{external_attention.2} parent=0
    _
  %s10 = ssub.s32 1, %s8
  %s11 = scalar_select 0, %s10, %s8
  $region1: #{external_attention.2} parent=0
    #allocation4 [shape = 'u8[65536]{0}', space=vmem, size = 0x10000, scoped, tag = 'output window, operand 0']
    loop: start=0, step=1, limit=6
    $region2: #{external_attention.2} parent=1 // loop_pre_header
      _
    $region3: #{external_attention.2} parent=1 // loop_header
      %s13 = sphi 0, %s17
      %p14 = scmp.ge.s32.totalorder %s13, 6
      %s20 = sphi 0, %s32
      %s21 = sphi 0, %s28
      %s22 = sphi 0, %s20
      %s23 = sphi 0, %s21
      %s24 = sphi 0, %s22
      %s25 = sphi 0, %s23
      %s37 = sphi 0, %s39
      %s40 = sphi 0, %s37
      %s41 = sphi 0, %s40
      %s57 = sphi 0, %s41
      %s61 = sphi 0, %s61
      %s63 = sphi 0, %s61
      %s64 = sphi 0, %s63
      %s78 = sphi 0, %s64
      %s82 = sphi 0, %s82
      %s84 = sphi 0, %s82
      %s85 = sphi 0, %s84
      %s99 = sphi 0, %s85
      %s103 = sphi 0, %s103
      %s105 = sphi 0, %s103
      %s106 = sphi 0, %s105
      %s120 = sphi 0, %s106
      %s128 = sphi 0, %s130
      %s131 = sphi 0, %s128
      %s132 = sphi 0, %s131
      %s148 = sphi 0, %s132
      %s154 = sphi 0, %s156
      %s157 = sphi 0, %s154
      %s158 = sphi 0, %s157
      %s174 = sphi 0, %s158
      %s180 = sphi 0, %s182
      %s183 = sphi 0, %s180
      %s184 = sphi 0, %s183
      %s200 = sphi 0, %s184
    $region4: #{external_attention.2} parent=1 // loop_header_branch
      %16 = sbr.rel (%p14) target = $region8
    $region5: #{external_attention.2} parent=1 // loop_body
      %s18 = ssub.s32 %s13, 1
      %s19 = ssub.s32 %s13, 2
      %s26 = sadd.s32 1, %s21
      %p27 = scmp.ge.s32.totalorder %s26, 2
      %s28 = scalar_select %p27, 0, %s26
      %s29 = sadd.s32 1, %s20
      %s30 = scalar_select %p27, %s29, %s20
      %p31 = scmp.ge.s32.totalorder %s30, 2
      %s32 = scalar_select %p31, 0, %s30
      %s33 = ssub.s32 %s20, %s32
      %s34 = ssub.s32 %s21, %s28
      %s35 = sor.u32 %s33, %s34
      %p36 = scmp.eq.s32.totalorder %s35, 0
      %s38 = sadd.s32 %s37, 1
      %s39 = scalar_select %p36, %s37, %s38
      %p42 = pneg %p36
      %p43 = scmp.eq.s32.totalorder %s13, 3
      %p44 = por %p42, %p43
      %p45 = scmp.ne.s32.totalorder %s37, %s40
      %p46 = scmp.eq.s32.totalorder %s13, 0
      %p47 = por %p45, %p46
      %p48 = scmp.ne.s32.totalorder %s37, %s40
      %p49 = scmp.eq.s32.totalorder %s18, 3
      %p50 = por %p48, %p49
      %p51 = scmp.ne.s32.totalorder %s40, %s41
      %p52 = scmp.eq.s32.totalorder %s18, 0
      %p53 = por %p51, %p52
      %p54 = scmp.ne.s32.totalorder %s40, %s41
      %p55 = scmp.eq.s32.totalorder %s19, 3
      %p56 = por %p54, %p55
      %p58 = scmp.ne.s32.totalorder %s41, %s57
      %p59 = scmp.eq.s32.totalorder %s19, 0
      %p60 = por %p58, %p59
      %s62 = sadd.s32 %s61, 1
      %p65 = scmp.eq.s32.totalorder %s13, 3
      %p66 = scmp.ne.s32.totalorder %s61, %s63
      %p67 = scmp.eq.s32.totalorder %s13, 0
      %p68 = por %p66, %p67
      %p69 = scmp.ne.s32.totalorder %s61, %s63
      %p70 = scmp.eq.s32.totalorder %s18, 3
      %p71 = por %p69, %p70
      %p72 = scmp.ne.s32.totalorder %s63, %s64
      %p73 = scmp.eq.s32.totalorder %s18, 0
      %p74 = por %p72, %p73
      %p75 = scmp.ne.s32.totalorder %s63, %s64
      %p76 = scmp.eq.s32.totalorder %s19, 3
      %p77 = por %p75, %p76
      %p79 = scmp.ne.s32.totalorder %s64, %s78
      %p80 = scmp.eq.s32.totalorder %s19, 0
      %p81 = por %p79, %p80
      %s83 = sadd.s32 %s82, 1
      %p86 = scmp.eq.s32.totalorder %s13, 3
      %p87 = scmp.ne.s32.totalorder %s82, %s84
      %p88 = scmp.eq.s32.totalorder %s13, 0
      %p89 = por %p87, %p88
      %p90 = scmp.ne.s32.totalorder %s82, %s84
      %p91 = scmp.eq.s32.totalorder %s18, 3
      %p92 = por %p90, %p91
      %p93 = scmp.ne.s32.totalorder %s84, %s85
      %p94 = scmp.eq.s32.totalorder %s18, 0
      %p95 = por %p93, %p94
      %p96 = scmp.ne.s32.totalorder %s84, %s85
      %p97 = scmp.eq.s32.totalorder %s19, 3
      %p98 = por %p96, %p97
      %p100 = scmp.ne.s32.totalorder %s85, %s99
      %p101 = scmp.eq.s32.totalorder %s19, 0
      %p102 = por %p100, %p101
      %s104 = sadd.s32 %s103, 1
      %p107 = scmp.eq.s32.totalorder %s13, 3
      %p108 = scmp.ne.s32.totalorder %s103, %s105
      %p109 = scmp.eq.s32.totalorder %s13, 0
      %p110 = por %p108, %p109
      %p111 = scmp.ne.s32.totalorder %s103, %s105
      %p112 = scmp.eq.s32.totalorder %s18, 3
      %p113 = por %p111, %p112
      %p114 = scmp.ne.s32.totalorder %s105, %s106
      %p115 = scmp.eq.s32.totalorder %s18, 0
      %p116 = por %p114, %p115
      %p117 = scmp.ne.s32.totalorder %s105, %s106
      %p118 = scmp.eq.s32.totalorder %s19, 3
      %p119 = por %p117, %p118
      %p121 = scmp.ne.s32.totalorder %s106, %s120
      %p122 = scmp.eq.s32.totalorder %s19, 0
      %p123 = por %p121, %p122
      %s124 = ssub.s32 %s20, %s32
      %s125 = ssub.s32 %s21, %s28
      %s126 = sor.u32 %s124, %s125
      %p127 = scmp.eq.s32.totalorder %s126, 0
      %s129 = sadd.s32 %s128, 1
      %s130 = scalar_select %p127, %s128, %s129
      %p133 = pneg %p127
      %p134 = scmp.eq.s32.totalorder %s13, 3
      %p135 = por %p133, %p134
      %p136 = scmp.ne.s32.totalorder %s128, %s131
      %p137 = scmp.eq.s32.totalorder %s13, 0
      %p138 = por %p136, %p137
      %p139 = scmp.ne.s32.totalorder %s128, %s131
      %p140 = scmp.eq.s32.totalorder %s18, 3
      %p141 = por %p139, %p140
      %p142 = scmp.ne.s32.totalorder %s131, %s132
      %p143 = scmp.eq.s32.totalorder %s18, 0
      %p144 = por %p142, %p143
      %p145 = scmp.ne.s32.totalorder %s131, %s132
      %p146 = scmp.eq.s32.totalorder %s19, 3
      %p147 = por %p145, %p146
      %p149 = scmp.ne.s32.totalorder %s132, %s148
      %p150 = scmp.eq.s32.totalorder %s19, 0
      %p151 = por %p149, %p150
      %s152 = ssub.s32 %s20, %s32
      %p153 = scmp.eq.s32.totalorder %s152, 0
      %s155 = sadd.s32 %s154, 1
      %s156 = scalar_select %p153, %s154, %s155
      %p159 = pneg %p153
      %p160 = scmp.eq.s32.totalorder %s13, 3
      %p161 = por %p159, %p160
      %p162 = scmp.ne.s32.totalorder %s154, %s157
      %p163 = scmp.eq.s32.totalorder %s13, 0
      %p164 = por %p162, %p163
      %p165 = scmp.ne.s32.totalorder %s154, %s157
      %p166 = scmp.eq.s32.totalorder %s18, 3
      %p167 = por %p165, %p166
      %p168 = scmp.ne.s32.totalorder %s157, %s158
      %p169 = scmp.eq.s32.totalorder %s18, 0
      %p170 = por %p168, %p169
      %p171 = scmp.ne.s32.totalorder %s157, %s158
      %p172 = scmp.eq.s32.totalorder %s19, 3
      %p173 = por %p171, %p172
      %p175 = scmp.ne.s32.totalorder %s158, %s174
      %p176 = scmp.eq.s32.totalorder %s19, 0
      %p177 = por %p175, %p176
      %s178 = ssub.s32 %s20, %s32
      %p179 = scmp.eq.s32.totalorder %s178, 0
      %s181 = sadd.s32 %s180, 1
      %s182 = scalar_select %p179, %s180, %s181
      %p185 = pneg %p179
      %p186 = scmp.eq.s32.totalorder %s13, 3
      %p187 = por %p185, %p186
      %p188 = scmp.ne.s32.totalorder %s180, %s183
      %p189 = scmp.eq.s32.totalorder %s13, 0
      %p190 = por %p188, %p189
      %p191 = scmp.ne.s32.totalorder %s180, %s183
      %p192 = scmp.eq.s32.totalorder %s18, 3
      %p193 = por %p191, %p192
      %p194 = scmp.ne.s32.totalorder %s183, %s184
      %p195 = scmp.eq.s32.totalorder %s18, 0
      %p196 = por %p194, %p195
      %p197 = scmp.ne.s32.totalorder %s183, %s184
      %p198 = scmp.eq.s32.totalorder %s19, 3
      %p199 = por %p197, %p198
      %p201 = scmp.ne.s32.totalorder %s184, %s200
      %p202 = scmp.eq.s32.totalorder %s19, 0
      %p203 = por %p201, %p202
      %p204 = scmp.le.s32.totalorder 1, %s13
      %p205 = scmp.lt.s32.totalorder %s13, 5
      %p206 = pnand %p204, %p205
      %p207 = pneg %p206
      // Predicated region
      $region9: #{external_attention.2} parent=5 // pred_check
        _
      $region10: #{external_attention.2} parent=5 // pred_check_branch
        %209 = sbr.rel (%p206) target = $region12
      $region11: #{external_attention.2} parent=5 // pred_region
        %s210 = ssub.s32 %s13, 1
        // Predicated region
        $region13: #{external_attention.2} parent=11 // pred_check
          %p211 = pneg %p74
        $region14: #{external_attention.2} parent=11 // pred_check_branch
          %213 = sbr.rel (%p211) target = $region16
        $region15: #{external_attention.2} parent=11 // pred_region
          _
        $region16: #{external_attention.2} parent=11 // pred_fallthru
          _
        // Predicated region
        $region17: #{external_attention.2} parent=11 // pred_check
          %p214 = pneg %p95
        $region18: #{external_attention.2} parent=11 // pred_check_branch
          %216 = sbr.rel (%p214) target = $region20
        $region19: #{external_attention.2} parent=11 // pred_region
          _
        $region20: #{external_attention.2} parent=11 // pred_fallthru
          _
        // Predicated region
        $region21: #{external_attention.2} parent=11 // pred_check
          %p217 = pneg %p116
        $region22: #{external_attention.2} parent=11 // pred_check_branch
          %219 = sbr.rel (%p217) target = $region24
        $region23: #{external_attention.2} parent=11 // pred_region
          _
        $region24: #{external_attention.2} parent=11 // pred_fallthru
          _
      $region12: #{external_attention.2} parent=5 // pred_fallthru
        _
      %p220 = scmp.lt.s32.totalorder %s13, 4
      // Predicated region
      $region25: #{external_attention.2} parent=5 // pred_check
        %p221 = pneg %p220
      $region26: #{external_attention.2} parent=5 // pred_check_branch
        %223 = sbr.rel (%p221) target = $region28
      $region27: #{external_attention.2} parent=5 // pred_region
        // Predicated region
        $region29: #{external_attention.2} parent=27 // pred_check
          %p224 = pneg %p47
        $region30: #{external_attention.2} parent=27 // pred_check_branch
          %226 = sbr.rel (%p224) target = $region32
        $region31: #{external_attention.2} parent=27 // pred_region
          %p227 = scmp.lt.s32.totalorder %s20, 1
          %s228 = scalar_select %p227, %s20, 1
          %p229 = scmp.lt.s32.totalorder %s21, 1
          %s230 = scalar_select %p229, %s21, 1
          %s231 = smul.addr %s228, 2
          %s232 = sadd.s32 %s230, %s231
          %s233 = smul.addr %s232, 4
          %s234 = scalar_lea.vmem %s0, %s233
        $region32: #{external_attention.2} parent=27 // pred_fallthru
          _
      $region28: #{external_attention.2} parent=5 // pred_fallthru
        _
      %p235 = scmp.le.s32.totalorder 1, %s13
      %p236 = scmp.lt.s32.totalorder %s13, 5
      %p237 = pnand %p235, %p236
      %p238 = pneg %p237
      // Predicated region
      $region33: #{external_attention.2} parent=5 // pred_check
        _
      $region34: #{external_attention.2} parent=5 // pred_check_branch
        %240 = sbr.rel (%p237) target = $region36
      $region35: #{external_attention.2} parent=5 // pred_region
        %s241 = ssub.s32 %s13, 1
        %p242 = scmp.lt.s32.totalorder %s22, 1
        %s243 = scalar_select %p242, %s22, 1
        %p244 = scmp.lt.s32.totalorder %s23, 1
        %s245 = scalar_select %p244, %s23, 1
        %s246 = smul.addr %s243, 2
        %s247 = sadd.s32 %s245, %s246
        %s248 = smul.addr %s247, 4
        %s249 = scalar_lea.vmem %s0, %s248
        %p250 = pneg %p53
        %p251 = pneg %p50
        %p252 = pneg %p74
        %p253 = pneg %p71
        %p254 = pneg %p95
        %p255 = pneg %p92
        %p256 = pneg %p116
        %p257 = pneg %p113
        %p258 = pneg %p144
        %p259 = pneg %p141
        %s260 = sand.u32 %s131, 1
        %s261 = sand.u32 %s131, 1
        %s262 = smul.addr %s261, 64
        %s263 = scalar_lea.vmem [#allocation4], %s262
        %p264 = pneg %p170
        %p265 = pneg %p167
        %p266 = scmp.lt.s32.totalorder %s22, 1
        %s267 = scalar_select %p266, %s22, 1
        %s268 = smul.addr %s267, 8
        %s269 = smul.addr %s268, 8
        %s270 = scalar_lea.vmem %s5, %s269
        %p271 = pneg %p196
        %p272 = pneg %p193
        %p273 = scmp.lt.s32.totalorder %s22, 1
        %s274 = scalar_select %p273, %s22, 1
        %s275 = smul.addr %s274, 8
        %s276 = smul.addr %s275, 8
        %s277 = scalar_lea.vmem %s6, %s276
        %p278 = scmp.lt.s32.totalorder %s22, 1
        %s279 = scalar_select %p278, %s22, 1
        %p280 = scmp.lt.s32.totalorder %s23, 1
        %s281 = scalar_select %p280, %s23, 1
        %s282 = smul.addr %s279, 2
        %s283 = sadd.s32 %s281, %s282
        %s284 = smul.addr %s283, 4
        %s285 = scalar_lea.vmem %s0, %s284
        %p286 = scmp.lt.s32.totalorder %s22, 1
        %s287 = scalar_select %p286, %s22, 1
        %s288 = smul.addr %s287, 8
        %s289 = smul.addr %s288, 8
        %s290 = scalar_lea.vmem %s5, %s289
        %p291 = scmp.lt.s32.totalorder %s22, 1
        %s292 = scalar_select %p291, %s22, 1
        %s293 = smul.addr %s292, 8
        %s294 = smul.addr %s293, 8
        %s295 = scalar_lea.vmem %s6, %s294
        %p296 = scmp.eq.s32.totalorder %s23, 0
        // Predicated region
        $region37: #{external_attention.2} parent=35 // pred_check
          %p297 = pneg %p296
        $region38: #{external_attention.2} parent=35 // pred_check_branch
          %299 = sbr.rel (%p297) target = $region40
        $region39: #{external_attention.2} parent=35 // pred_region
          %vm300 = vcmask 7168
          %301 = vst.msk [vmem:[#allocation2] sm:$0xff] %vm300, -inf
          %302 = vst.msk [vmem:[#allocation2 + $0x8] sm:$0xff] %vm300, -inf
          %303 = vst.msk [vmem:[#allocation2 + $0x10] sm:$0xff] %vm300, -inf
          %304 = vst.msk [vmem:[#allocation2 + $0x18] sm:$0xff] %vm300, -inf
          %305 = vst.msk [vmem:[#allocation2 + $0x20] sm:$0xff] %vm300, -inf
          %306 = vst.msk [vmem:[#allocation2 + $0x28] sm:$0xff] %vm300, -inf
          %307 = vst.msk [vmem:[#allocation2 + $0x30] sm:$0xff] %vm300, -inf
          %308 = vst.msk [vmem:[#allocation2 + $0x38] sm:$0xff] %vm300, -inf
          %309 = vst.msk [vmem:[#allocation3] sm:$0xff] %vm300, 0.0
          %310 = vst.msk [vmem:[#allocation3 + $0x8] sm:$0xff] %vm300, 0.0
          %311 = vst.msk [vmem:[#allocation3 + $0x10] sm:$0xff] %vm300, 0.0
          %312 = vst.msk [vmem:[#allocation3 + $0x18] sm:$0xff] %vm300, 0.0
          %313 = vst.msk [vmem:[#allocation3 + $0x20] sm:$0xff] %vm300, 0.0
          %314 = vst.msk [vmem:[#allocation3 + $0x28] sm:$0xff] %vm300, 0.0
          %315 = vst.msk [vmem:[#allocation3 + $0x30] sm:$0xff] %vm300, 0.0
          %316 = vst.msk [vmem:[#allocation3 + $0x38] sm:$0xff] %vm300, 0.0
        $region40: #{external_attention.2} parent=35 // pred_fallthru
          _
        %v317 = vld [vmem:[%s285] sm:$0xf]
        %v318 = vld [vmem:[%s1] sm:$0xf]
        %v319 = vld [vmem:[%s2] sm:$0xf]
        %321 = vset.pattern.permute.xlu0 0
        %322 = vperm.xlu0 %321, %v319
        %v323 = vpop.permute.xlu0 %322
        %vm325 = vcmask 31744
        %v327 = vsel %vm325, %v318, 0
        %vm329 = vcmask 1043456
        %v331 = vsel %vm329, %v317, 0
        %333 = vmatprep.subr.mxu0 0.0
        %334 = vmatpush1.msra.mxu0 %v331
        %335 = vmatprep.subr.mxu0 0.0
        %336 = vmatpush1.msra.mxu0 0.0
        %337 = vmatprep.subr.mxu0 0.0
        %338 = vmatpush1.msra.mxu0 0.0
        %339 = vmatprep.subr.mxu0 0.0
        %340 = vmatpush1.msra.mxu0 0.0
        %341 = vmatprep.subr.mxu0 0.0
        %342 = vmatpush1.msra.mxu0 0.0
        %343 = vmatprep.subr.mxu0 0.0
        %344 = vmatpush1.msra.mxu0 0.0
        %345 = vmatprep.subr.mxu0 0.0
        %346 = vmatpush1.msra.mxu0 0.0
        %347 = vmatprep.subr.mxu0 0.0
        %348 = vmatpush1.msra.mxu0 0.0
        %349 = vmatprep.subr.mxu0 0.0
        %350 = vmatpush1.msra.mxu0 0.0
        %351 = vmatprep.subr.mxu0 0.0
        %352 = vmatpush1.msra.mxu0 0.0
        %353 = vmatprep.subr.mxu0 0.0
        %354 = vmatpush1.msra.mxu0 0.0
        %355 = vmatprep.subr.mxu0 0.0
        %356 = vmatpush1.msra.mxu0 0.0
        %357 = vmatprep.subr.mxu0 0.0
        %358 = vmatpush1.msra.mxu0 0.0
        %359 = vmatprep.subr.mxu0 0.0
        %360 = vmatpush1.msra.mxu0 0.0
        %361 = vmatprep.subr.mxu0 0.0
        %362 = vmatpush1.msra.mxu0 0.0
        %363 = vmatprep.subr.mxu0 0.0
        %364 = vmatpush1.msra.mxu0 0.0
        %365 = vmatprep.subr.mxu0 0.0
        %366 = vmatpush1.msra.mxu0 0.0
        %367 = vmatprep.subr.mxu0 0.0
        %368 = vmatpush1.msra.mxu0 0.0
        %369 = vmatprep.subr.mxu0 0.0
        %370 = vmatpush1.msra.mxu0 0.0
        %371 = vmatprep.subr.mxu0 0.0
        %372 = vmatpush1.msra.mxu0 0.0
        %373 = vmatprep.subr.mxu0 0.0
        %374 = vmatpush1.msra.mxu0 0.0
        %375 = vmatprep.subr.mxu0 0.0
        %376 = vmatpush1.msra.mxu0 0.0
        %377 = vmatprep.subr.mxu0 0.0
        %378 = vmatpush1.msra.mxu0 0.0
        %379 = vmatprep.subr.mxu0 0.0
        %380 = vmatpush1.msra.mxu0 0.0
        %381 = vmatprep.subr.mxu0 0.0
        %382 = vmatpush1.msra.mxu0 0.0
        %383 = vmatprep.subr.mxu0 0.0
        %384 = vmatpush1.msra.mxu0 0.0
        %385 = vmatprep.subr.mxu0 0.0
        %386 = vmatpush1.msra.mxu0 0.0
        %387 = vmatprep.subr.mxu0 0.0
        %388 = vmatpush1.msra.mxu0 0.0
        %389 = vmatprep.subr.mxu0 0.0
        %390 = vmatpush1.msra.mxu0 0.0
        %391 = vmatprep.subr.mxu0 0.0
        %392 = vmatpush1.msra.mxu0 0.0
        %393 = vmatprep.subr.mxu0 0.0
        %394 = vmatpush1.msra.mxu0 0.0
        %395 = vmatprep.subr.mxu0 0.0
        %396 = vmatpush1.msra.mxu0 0.0
        %397 = vmatprep.mubr.f32.mxu0 0.0
        %398 = vmatmul.mubr.f32.gmra.mrb[0].mxu0 %v327
        %v399 = vpop.f32.mrb[0].mxu0
        %v400 = vadd.f32 %v323, %v399
        %v401 = vpop.f32.mrb[0].mxu0
        %402 = vdwg.mxu0
        %v403 = vld [vmem:[%s3] sm:$0xff]
        %v404 = vld [vmem:[%s3 + $0x8] sm:$0xff]
        %v405 = vld [vmem:[%s3 + $0x10] sm:$0xff]
        %v406 = vld [vmem:[%s3 + $0x18] sm:$0xff]
        %v407 = vld [vmem:[%s3 + $0x20] sm:$0xff]
        %v408 = vld [vmem:[%s3 + $0x28] sm:$0xff]
        %v409 = vld [vmem:[%s3 + $0x30] sm:$0xff]
        %v410 = vld [vmem:[%s3 + $0x38] sm:$0xff]
        %v412 = vsel %vm325, %v403, 0
        %v415 = vsel %vm325, %v404, 0
        %v418 = vsel %vm325, %v405, 0
        %v421 = vsel %vm325, %v406, 0
        %v424 = vsel %vm325, %v407, 0
        %v427 = vsel %vm325, %v408, 0
        %v430 = vsel %vm325, %v409, 0
        %v433 = vsel %vm325, %v410, 0
        %v436 = vsel %vm329, %v400, 0
        %438 = vmatprep.subr.mxu0 0.0
        %439 = vmatpush1.msra.mxu0 %v436
        %440 = vmatprep.subr.mxu0 0.0
        %441 = vmatpush1.msra.mxu0 0.0
        %442 = vmatprep.subr.mxu0 0.0
        %443 = vmatpush1.msra.mxu0 0.0
        %444 = vmatprep.subr.mxu0 0.0
        %445 = vmatpush1.msra.mxu0 0.0
        %446 = vmatprep.subr.mxu0 0.0
        %447 = vmatpush1.msra.mxu0 0.0
        %448 = vmatprep.subr.mxu0 0.0
        %449 = vmatpush1.msra.mxu0 0.0
        %450 = vmatprep.subr.mxu0 0.0
        %451 = vmatpush1.msra.mxu0 0.0
        %452 = vmatprep.subr.mxu0 0.0
        %453 = vmatpush1.msra.mxu0 0.0
        %454 = vmatprep.subr.mxu0 0.0
        %455 = vmatpush1.msra.mxu0 0.0
        %456 = vmatprep.subr.mxu0 0.0
        %457 = vmatpush1.msra.mxu0 0.0
        %458 = vmatprep.subr.mxu0 0.0
        %459 = vmatpush1.msra.mxu0 0.0
        %460 = vmatprep.subr.mxu0 0.0
        %461 = vmatpush1.msra.mxu0 0.0
        %462 = vmatprep.subr.mxu0 0.0
        %463 = vmatpush1.msra.mxu0 0.0
        %464 = vmatprep.subr.mxu0 0.0
        %465 = vmatpush1.msra.mxu0 0.0
        %466 = vmatprep.subr.mxu0 0.0
        %467 = vmatpush1.msra.mxu0 0.0
        %468 = vmatprep.subr.mxu0 0.0
        %469 = vmatpush1.msra.mxu0 0.0
        %470 = vmatprep.subr.mxu0 0.0
        %471 = vmatpush1.msra.mxu0 0.0
        %472 = vmatprep.subr.mxu0 0.0
        %473 = vmatpush1.msra.mxu0 0.0
        %474 = vmatprep.subr.mxu0 0.0
        %475 = vmatpush1.msra.mxu0 0.0
        %476 = vmatprep.subr.mxu0 0.0
        %477 = vmatpush1.msra.mxu0 0.0
        %478 = vmatprep.subr.mxu0 0.0
        %479 = vmatpush1.msra.mxu0 0.0
        %480 = vmatprep.subr.mxu0 0.0
        %481 = vmatpush1.msra.mxu0 0.0
        %482 = vmatprep.subr.mxu0 0.0
        %483 = vmatpush1.msra.mxu0 0.0
        %484 = vmatprep.subr.mxu0 0.0
        %485 = vmatpush1.msra.mxu0 0.0
        %486 = vmatprep.subr.mxu0 0.0
        %487 = vmatpush1.msra.mxu0 0.0
        %488 = vmatprep.subr.mxu0 0.0
        %489 = vmatpush1.msra.mxu0 0.0
        %490 = vmatprep.subr.mxu0 0.0
        %491 = vmatpush1.msra.mxu0 0.0
        %492 = vmatprep.subr.mxu0 0.0
        %493 = vmatpush1.msra.mxu0 0.0
        %494 = vmatprep.subr.mxu0 0.0
        %495 = vmatpush1.msra.mxu0 0.0
        %496 = vmatprep.subr.mxu0 0.0
        %497 = vmatpush1.msra.mxu0 0.0
        %498 = vmatprep.subr.mxu0 0.0
        %499 = vmatpush1.msra.mxu0 0.0
        %500 = vmatprep.subr.mxu0 0.0
        %501 = vmatpush1.msra.mxu0 0.0
        %502 = vmatprep.mubr.f32.mxu0 0.0
        %503 = vmatmul.mubr.f32.gmra.mrb[0].mxu0 %v412
        %v504 = vpop.f32.mrb[0].mxu0
        %v505 = vadd.f32 0.0, %v504
        %v506 = vpop.f32.mrb[0].mxu0
        %507 = vmatprep.mubr.f32.mxu0 0.0
        %508 = vmatmul.mubr.f32.gmra.mrb[0].mxu0 %v415
        %v509 = vpop.f32.mrb[0].mxu0
        %v510 = vadd.f32 0.0, %v509
        %v511 = vpop.f32.mrb[0].mxu0
        %512 = vmatprep.mubr.f32.mxu0 0.0
        %513 = vmatmul.mubr.f32.gmra.mrb[0].mxu0 %v418
        %v514 = vpop.f32.mrb[0].mxu0
        %v515 = vadd.f32 0.0, %v514
        %v516 = vpop.f32.mrb[0].mxu0
        %517 = vmatprep.mubr.f32.mxu0 0.0
        %518 = vmatmul.mubr.f32.gmra.mrb[0].mxu0 %v421
        %v519 = vpop.f32.mrb[0].mxu0
        %v520 = vadd.f32 0.0, %v519
        %v521 = vpop.f32.mrb[0].mxu0
        %522 = vmatprep.mubr.f32.mxu0 0.0
        %523 = vmatmul.mubr.f32.gmra.mrb[0].mxu0 %v424
        %v524 = vpop.f32.mrb[0].mxu0
        %v525 = vadd.f32 0.0, %v524
        %v526 = vpop.f32.mrb[0].mxu0
        %527 = vmatprep.mubr.f32.mxu0 0.0
        %528 = vmatmul.mubr.f32.gmra.mrb[0].mxu0 %v427
        %v529 = vpop.f32.mrb[0].mxu0
        %v530 = vadd.f32 0.0, %v529
        %v531 = vpop.f32.mrb[0].mxu0
        %532 = vmatprep.mubr.f32.mxu0 0.0
        %533 = vmatmul.mubr.f32.gmra.mrb[0].mxu0 %v430
        %v534 = vpop.f32.mrb[0].mxu0
        %v535 = vadd.f32 0.0, %v534
        %v536 = vpop.f32.mrb[0].mxu0
        %537 = vmatprep.mubr.f32.mxu0 0.0
        %538 = vmatmul.mubr.f32.gmra.mrb[0].mxu0 %v433
        %v539 = vpop.f32.mrb[0].mxu0
        %v540 = vadd.f32 0.0, %v539
        %v541 = vpop.f32.mrb[0].mxu0
        %542 = vdwg.mxu0
        %543 = vst [vmem:[%s263] sm:$0xff] %v505
        %544 = vst [vmem:[%s263 + $0x8] sm:$0xff] %v510
        %545 = vst [vmem:[%s263 + $0x10] sm:$0xff] %v515
        %546 = vst [vmem:[%s263 + $0x18] sm:$0xff] %v520
        %547 = vst [vmem:[%s263 + $0x20] sm:$0xff] %v525
        %548 = vst [vmem:[%s263 + $0x28] sm:$0xff] %v530
        %549 = vst [vmem:[%s263 + $0x30] sm:$0xff] %v535
        %550 = vst [vmem:[%s263 + $0x38] sm:$0xff] %v540
        %v551 = vld [vmem:[#allocation2] sm:$0xff]
        %v552 = vld [vmem:[#allocation2 + $0x8] sm:$0xff]
        %v553 = vld [vmem:[#allocation2 + $0x10] sm:$0xff]
        %v554 = vld [vmem:[#allocation2 + $0x18] sm:$0xff]
        %v555 = vld [vmem:[#allocation2 + $0x20] sm:$0xff]
        %v556 = vld [vmem:[#allocation2 + $0x28] sm:$0xff]
        %v557 = vld [vmem:[#allocation2 + $0x30] sm:$0xff]
        %v558 = vld [vmem:[#allocation2 + $0x38] sm:$0xff]
        %559 = vmax.xlane.f32.xlu0 %v505
        %v560 = vpop.xlane.xlu0 %559
        %561 = vmax.xlane.f32.xlu0 %v510
        %v562 = vpop.xlane.xlu0 %561
        %563 = vmax.xlane.f32.xlu0 %v515
        %v564 = vpop.xlane.xlu0 %563
        %565 = vmax.xlane.f32.xlu0 %v520
        %v566 = vpop.xlane.xlu0 %565
        %567 = vmax.xlane.f32.xlu0 %v525
        %v568 = vpop.xlane.xlu0 %567
        %569 = vmax.xlane.f32.xlu0 %v530
        %v570 = vpop.xlane.xlu0 %569
        %571 = vmax.xlane.f32.xlu0 %v535
        %v572 = vpop.xlane.xlu0 %571
        %573 = vmax.xlane.f32.xlu0 %v540
        %v574 = vpop.xlane.xlu0 %573
        %v575 = vmax.f32 %v551, %v560
        %v576 = vmax.f32 %v552, %v562
        %v577 = vmax.f32 %v553, %v564
        %v578 = vmax.f32 %v554, %v566
        %v579 = vmax.f32 %v555, %v568
        %v580 = vmax.f32 %v556, %v570
        %v581 = vmax.f32 %v557, %v572
        %v582 = vmax.f32 %v558, %v574
        %v583 = vld [vmem:[#allocation3] sm:$0xff]
        %v584 = vld [vmem:[#allocation3 + $0x8] sm:$0xff]
        %v585 = vld [vmem:[#allocation3 + $0x10] sm:$0xff]
        %v586 = vld [vmem:[#allocation3 + $0x18] sm:$0xff]
        %v587 = vld [vmem:[#allocation3 + $0x20] sm:$0xff]
        %v588 = vld [vmem:[#allocation3 + $0x28] sm:$0xff]
        %v589 = vld [vmem:[#allocation3 + $0x30] sm:$0xff]
        %v590 = vld [vmem:[#allocation3 + $0x38] sm:$0xff]
        %v591 = vsub.f32 %v551, %v575
        %v592 = vsub.f32 %v552, %v576
        %v593 = vsub.f32 %v553, %v577
        %v594 = vsub.f32 %v554, %v578
        %v595 = vsub.f32 %v555, %v579
        %v596 = vsub.f32 %v556, %v580
        %v597 = vsub.f32 %v557, %v581
        %v598 = vsub.f32 %v558, %v582
        %v599 = vmul.f32 %v591, 1.442695
        %v600 = vpow.pop %v599
        %v601 = vmul.f32 %v592, 1.442695
        %v602 = vpow.pop %v601
        %v603 = vmul.f32 %v593, 1.442695
        %v604 = vpow.pop %v603
        %v605 = vmul.f32 %v594, 1.442695
        %v606 = vpow.pop %v605
        %v607 = vmul.f32 %v595, 1.442695
        %v608 = vpow.pop %v607
        %v609 = vmul.f32 %v596, 1.442695
        %v610 = vpow.pop %v609
        %v611 = vmul.f32 %v597, 1.442695
        %v612 = vpow.pop %v611
        %v613 = vmul.f32 %v598, 1.442695
        %v614 = vpow.pop %v613
        %v615 = vmul.f32 %v583, %v600
        %v616 = vmul.f32 %v584, %v602
        %v617 = vmul.f32 %v585, %v604
        %v618 = vmul.f32 %v586, %v606
        %v619 = vmul.f32 %v587, %v608
        %v620 = vmul.f32 %v588, %v610
        %v621 = vmul.f32 %v589, %v612
        %v622 = vmul.f32 %v590, %v614
        %624 = vset.pattern.permute.xlu0 0
        %625 = vperm.xlu0 %624, %v575
        %v626 = vpop.permute.xlu0 %625
        %629 = vset.pattern.permute.xlu0 0
        %630 = vperm.xlu0 %629, %v576
        %v631 = vpop.permute.xlu0 %630
        %634 = vset.pattern.permute.xlu0 0
        %635 = vperm.xlu0 %634, %v577
        %v636 = vpop.permute.xlu0 %635
        %639 = vset.pattern.permute.xlu0 0
        %640 = vperm.xlu0 %639, %v578
        %v641 = vpop.permute.xlu0 %640
        %644 = vset.pattern.permute.xlu0 0
        %645 = vperm.xlu0 %644, %v579
        %v646 = vpop.permute.xlu0 %645
        %649 = vset.pattern.permute.xlu0 0
        %650 = vperm.xlu0 %649, %v580
        %v651 = vpop.permute.xlu0 %650
        %654 = vset.pattern.permute.xlu0 0
        %655 = vperm.xlu0 %654, %v581
        %v656 = vpop.permute.xlu0 %655
        %659 = vset.pattern.permute.xlu0 0
        %660 = vperm.xlu0 %659, %v582
        %v661 = vpop.permute.xlu0 %660
        %v663 = vsub.f32 %v505, %v626
        %v664 = vsub.f32 %v510, %v631
        %v665 = vsub.f32 %v515, %v636
        %v666 = vsub.f32 %v520, %v641
        %v667 = vsub.f32 %v525, %v646
        %v668 = vsub.f32 %v530, %v651
        %v669 = vsub.f32 %v535, %v656
        %v670 = vsub.f32 %v540, %v661
        %v671 = vmul.f32 %v663, 1.442695
        %v672 = vpow.pop %v671
        %v673 = vmul.f32 %v664, 1.442695
        %v674 = vpow.pop %v673
        %v675 = vmul.f32 %v665, 1.442695
        %v676 = vpow.pop %v675
        %v677 = vmul.f32 %v666, 1.442695
        %v678 = vpow.pop %v677
        %v679 = vmul.f32 %v667, 1.442695
        %v680 = vpow.pop %v679
        %v681 = vmul.f32 %v668, 1.442695
        %v682 = vpow.pop %v681
        %v683 = vmul.f32 %v669, 1.442695
        %v684 = vpow.pop %v683
        %v685 = vmul.f32 %v670, 1.442695
        %v686 = vpow.pop %v685
        %687 = vadd.xlane.f32.xlu0 %v672
        %v688 = vpop.xlane.xlu0 %687
        %689 = vadd.xlane.f32.xlu0 %v674
        %v690 = vpop.xlane.xlu0 %689
        %691 = vadd.xlane.f32.xlu0 %v676
        %v692 = vpop.xlane.xlu0 %691
        %693 = vadd.xlane.f32.xlu0 %v678
        %v694 = vpop.xlane.xlu0 %693
        %695 = vadd.xlane.f32.xlu0 %v680
        %v696 = vpop.xlane.xlu0 %695
        %697 = vadd.xlane.f32.xlu0 %v682
        %v698 = vpop.xlane.xlu0 %697
        %699 = vadd.xlane.f32.xlu0 %v684
        %v700 = vpop.xlane.xlu0 %699
        %701 = vadd.xlane.f32.xlu0 %v686
        %v702 = vpop.xlane.xlu0 %701
        %v703 = vadd.f32 %v615, %v688
        %v704 = vadd.f32 %v616, %v690
        %v705 = vadd.f32 %v617, %v692
        %v706 = vadd.f32 %v618, %v694
        %v707 = vadd.f32 %v619, %v696
        %v708 = vadd.f32 %v620, %v698
        %v709 = vadd.f32 %v621, %v700
        %v710 = vadd.f32 %v622, %v702
        %vm711 = vcmask 7168
        %712 = vst.msk [vmem:[#allocation3] sm:$0xff] %vm711, %v703
        %713 = vst.msk [vmem:[#allocation3 + $0x8] sm:$0xff] %vm711, %v704
        %714 = vst.msk [vmem:[#allocation3 + $0x10] sm:$0xff] %vm711, %v705
        %715 = vst.msk [vmem:[#allocation3 + $0x18] sm:$0xff] %vm711, %v706
        %716 = vst.msk [vmem:[#allocation3 + $0x20] sm:$0xff] %vm711, %v707
        %717 = vst.msk [vmem:[#allocation3 + $0x28] sm:$0xff] %vm711, %v708
        %718 = vst.msk [vmem:[#allocation3 + $0x30] sm:$0xff] %vm711, %v709
        %719 = vst.msk [vmem:[#allocation3 + $0x38] sm:$0xff] %vm711, %v710
        %720 = vst.msk [vmem:[#allocation2] sm:$0xff] %vm711, %v575
        %721 = vst.msk [vmem:[#allocation2 + $0x8] sm:$0xff] %vm711, %v576
        %722 = vst.msk [vmem:[#allocation2 + $0x10] sm:$0xff] %vm711, %v577
        %723 = vst.msk [vmem:[#allocation2 + $0x18] sm:$0xff] %vm711, %v578
        %724 = vst.msk [vmem:[#allocation2 + $0x20] sm:$0xff] %vm711, %v579
        %725 = vst.msk [vmem:[#allocation2 + $0x28] sm:$0xff] %vm711, %v580
        %726 = vst.msk [vmem:[#allocation2 + $0x30] sm:$0xff] %vm711, %v581
        %727 = vst.msk [vmem:[#allocation2 + $0x38] sm:$0xff] %vm711, %v582
        %p728 = scmp.eq.s32.totalorder %s23, 1
        // Predicated region
        $region41: #{external_attention.2} parent=35 // pred_check
          %p729 = pneg %p728
        $region42: #{external_attention.2} parent=35 // pred_check_branch
          %731 = sbr.rel (%p729) target = $region44
        $region43: #{external_attention.2} parent=35 // pred_region
          %v732 = vld [vmem:[#allocation2] sm:$0xff]
          %v733 = vld [vmem:[#allocation2 + $0x8] sm:$0xff]
          %v734 = vld [vmem:[#allocation2 + $0x10] sm:$0xff]
          %v735 = vld [vmem:[#allocation2 + $0x18] sm:$0xff]
          %v736 = vld [vmem:[#allocation2 + $0x20] sm:$0xff]
          %v737 = vld [vmem:[#allocation2 + $0x28] sm:$0xff]
          %v738 = vld [vmem:[#allocation2 + $0x30] sm:$0xff]
          %v739 = vld [vmem:[#allocation2 + $0x38] sm:$0xff]
          %740 = vst.msk [vmem:[%s290] sm:$0xff] %vm711, %v732
          %741 = vst.msk [vmem:[%s290 + $0x8] sm:$0xff] %vm711, %v733
          %742 = vst.msk [vmem:[%s290 + $0x10] sm:$0xff] %vm711, %v734
          %743 = vst.msk [vmem:[%s290 + $0x18] sm:$0xff] %vm711, %v735
          %744 = vst.msk [vmem:[%s290 + $0x20] sm:$0xff] %vm711, %v736
          %745 = vst.msk [vmem:[%s290 + $0x28] sm:$0xff] %vm711, %v737
          %746 = vst.msk [vmem:[%s290 + $0x30] sm:$0xff] %vm711, %v738
          %747 = vst.msk [vmem:[%s290 + $0x38] sm:$0xff] %vm711, %v739
          %v748 = vld [vmem:[#allocation3] sm:$0xff]
          %v749 = vld [vmem:[#allocation3 + $0x8] sm:$0xff]
          %v750 = vld [vmem:[#allocation3 + $0x10] sm:$0xff]
          %v751 = vld [vmem:[#allocation3 + $0x18] sm:$0xff]
          %v752 = vld [vmem:[#allocation3 + $0x20] sm:$0xff]
          %v753 = vld [vmem:[#allocation3 + $0x28] sm:$0xff]
          %v754 = vld [vmem:[#allocation3 + $0x30] sm:$0xff]
          %v755 = vld [vmem:[#allocation3 + $0x38] sm:$0xff]
          %756 = vst.msk [vmem:[%s295] sm:$0xff] %vm711, %v748
          %757 = vst.msk [vmem:[%s295 + $0x8] sm:$0xff] %vm711, %v749
          %758 = vst.msk [vmem:[%s295 + $0x10] sm:$0xff] %vm711, %v750
          %759 = vst.msk [vmem:[%s295 + $0x18] sm:$0xff] %vm711, %v751
          %760 = vst.msk [vmem:[%s295 + $0x20] sm:$0xff] %vm711, %v752
          %761 = vst.msk [vmem:[%s295 + $0x28] sm:$0xff] %vm711, %v753
          %762 = vst.msk [vmem:[%s295 + $0x30] sm:$0xff] %vm711, %v754
          %763 = vst.msk [vmem:[%s295 + $0x38] sm:$0xff] %vm711, %v755
        $region44: #{external_attention.2} parent=35 // pred_fallthru
          _
        %s764 = sand.u32 %s131, 1
        %s765 = sand.u32 %s131, 1
        %s766 = smul.addr %s765, 64
        %s767 = scalar_lea.vmem [#allocation4], %s766
        %p768 = scmp.lt.s32.totalorder %s22, 1
        %s769 = scalar_select %p768, %s22, 1
        %s770 = smul.addr %s769, 8
        %s771 = smul.addr %s770, 8
        %s772 = scalar_lea.vmem %s5, %s771
        %p773 = scmp.lt.s32.totalorder %s22, 1
        %s774 = scalar_select %p773, %s22, 1
        %s775 = smul.addr %s774, 8
        %s776 = smul.addr %s775, 8
        %s777 = scalar_lea.vmem %s6, %s776
        // Predicated region
        $region45: #{external_attention.2} parent=35 // pred_check
          %p778 = pneg %p141
        $region46: #{external_attention.2} parent=35 // pred_check_branch
          %780 = sbr.rel (%p778) target = $region48
        $region47: #{external_attention.2} parent=35 // pred_region
          %s781 = smul.addr %s22, 16
          %s782 = sadd.s32 %s23, %s781
          %s783 = smul.addr %s782, 8
          %s784 = scalar_lea.vmem %s4, %s783
          // Predicated region
          $region49: #{external_attention.2} parent=47 // pred_check
            _
          $region50: #{external_attention.2} parent=47 // pred_check_branch
            %786 = sbr.rel (0) target = $region52
          $region51: #{external_attention.2} parent=47 // pred_region
            // Predicated region
            $region53: #{external_attention.2} parent=51 // pred_check
              _
            $region54: #{external_attention.2} parent=51 // pred_check_branch
              %788 = sbr.rel (0) target = $region56
            $region55: #{external_attention.2} parent=51 // pred_region
              // Predicated region
              $region68: #{external_attention.2} parent=55 // pred_check
                _
              $region69: #{external_attention.2} parent=55 // pred_check_branch
                %817 = sbr.rel (0) target = $region71
              $region70: #{external_attention.2} parent=55 // pred_region
                loop: start=0, step=1, limit=1
                $region72: #{external_attention.2} parent=70 // loop_pre_header
                  _
                $region73: #{external_attention.2} parent=70 // loop_header
                  %s819 = sphi 0, %s823
                  %p820 = scmp.ge.s32.totalorder %s819, 1
                  %s824 = sphi %s767, %s767
                  %s825 = sphi %s784, %s784
                $region74: #{external_attention.2} parent=70 // loop_header_branch
                  %822 = sbr.rel (%p820) target = $region78
                $region75: #{external_attention.2} parent=70 // loop_body
                  %v826 = vld [vmem:[%s824] sm:$0xff]
                  %827 = vst [vmem:[%s825] sm:$0xff] %v826
                  %v828 = vld [vmem:[%s824 + $0x8] sm:$0xff]
                  %829 = vst [vmem:[%s825 + $0x10] sm:$0xff] %v828
                  %v830 = vld [vmem:[%s824 + $0x10] sm:$0xff]
                  %831 = vst [vmem:[%s825 + $0x20] sm:$0xff] %v830
                  %v832 = vld [vmem:[%s824 + $0x18] sm:$0xff]
                  %833 = vst [vmem:[%s825 + $0x30] sm:$0xff] %v832
                  %v834 = vld [vmem:[%s824 + $0x20] sm:$0xff]
                  %835 = vst [vmem:[%s825 + $0x40] sm:$0xff] %v834
                  %v836 = vld [vmem:[%s824 + $0x28] sm:$0xff]
                  %837 = vst [vmem:[%s825 + $0x50] sm:$0xff] %v836
                  %v838 = vld [vmem:[%s824 + $0x30] sm:$0xff]
                  %839 = vst [vmem:[%s825 + $0x60] sm:$0xff] %v838
                  %v840 = vld [vmem:[%s824 + $0x38] sm:$0xff]
                  %841 = vst [vmem:[%s825 + $0x70] sm:$0xff] %v840
                $region76: #{external_attention.2} parent=70 // loop_footer
                  %s823 = sadd.s32 1, %s819
                $region77: #{external_attention.2} parent=70 // loop_footer_branch
                  %818 = sbr.rel target = $region73
                $region78: #{external_attention.2} parent=70 // loop_exit
                  _
              $region71: #{external_attention.2} parent=55 // pred_fallthru
                _
              // Predicated region
              $region79: #{external_attention.2} parent=55 // pred_check
                _
              $region80: #{external_attention.2} parent=55 // pred_check_branch
                %843 = sbr.rel target = $region82
              $region81: #{external_attention.2} parent=55 // pred_region
                _
              $region82: #{external_attention.2} parent=55 // pred_fallthru
                _
            $region56: #{external_attention.2} parent=51 // pred_fallthru
              _
            // Predicated region
            $region57: #{external_attention.2} parent=51 // pred_check
              _
            $region58: #{external_attention.2} parent=51 // pred_check_branch
              %790 = sbr.rel target = $region60
            $region59: #{external_attention.2} parent=51 // pred_region
              loop: start=0, step=1, limit=1
              $region61: #{external_attention.2} parent=59 // loop_pre_header
                _
              $region62: #{external_attention.2} parent=59 // loop_header
                %s793 = sphi 0, %s797
                %p794 = scmp.ge.s32.totalorder %s793, 1
                %s798 = sphi %s767, %s767
                %s799 = sphi %s784, %s784
              $region63: #{external_attention.2} parent=59 // loop_header_branch
                %796 = sbr.rel (%p794) target = $region67
              $region64: #{external_attention.2} parent=59 // loop_body
                %v800 = vld [vmem:[%s798] sm:$0xff]
                %801 = vst [vmem:[%s799] sm:$0xff] %v800
                %v802 = vld [vmem:[%s798 + $0x8] sm:$0xff]
                %803 = vst [vmem:[%s799 + $0x10] sm:$0xff] %v802
                %v804 = vld [vmem:[%s798 + $0x10] sm:$0xff]
                %805 = vst [vmem:[%s799 + $0x20] sm:$0xff] %v804
                %v806 = vld [vmem:[%s798 + $0x18] sm:$0xff]
                %807 = vst [vmem:[%s799 + $0x30] sm:$0xff] %v806
                %v808 = vld [vmem:[%s798 + $0x20] sm:$0xff]
                %809 = vst [vmem:[%s799 + $0x40] sm:$0xff] %v808
                %v810 = vld [vmem:[%s798 + $0x28] sm:$0xff]
                %811 = vst [vmem:[%s799 + $0x50] sm:$0xff] %v810
                %v812 = vld [vmem:[%s798 + $0x30] sm:$0xff]
                %813 = vst [vmem:[%s799 + $0x60] sm:$0xff] %v812
                %v814 = vld [vmem:[%s798 + $0x38] sm:$0xff]
                %815 = vst [vmem:[%s799 + $0x70] sm:$0xff] %v814
              $region65: #{external_attention.2} parent=59 // loop_footer
                %s797 = sadd.s32 1, %s793
              $region66: #{external_attention.2} parent=59 // loop_footer_branch
                %792 = sbr.rel target = $region62
              $region67: #{external_attention.2} parent=59 // loop_exit
                _
            $region60: #{external_attention.2} parent=51 // pred_fallthru
              _
          $region52: #{external_attention.2} parent=47 // pred_fallthru
            _
          %844 = vnop
        $region48: #{external_attention.2} parent=35 // pred_fallthru
          _
        // Predicated region
        $region83: #{external_attention.2} parent=35 // pred_check
          %p845 = pneg %p167
        $region84: #{external_attention.2} parent=35 // pred_check_branch
          %847 = sbr.rel (%p845) target = $region86
        $region85: #{external_attention.2} parent=35 // pred_region
          _
        $region86: #{external_attention.2} parent=35 // pred_fallthru
          _
        // Predicated region
        $region87: #{external_attention.2} parent=35 // pred_check
          %p848 = pneg %p193
        $region88: #{external_attention.2} parent=35 // pred_check_branch
          %850 = sbr.rel (%p848) target = $region90
        $region89: #{external_attention.2} parent=35 // pred_region
          _
        $region90: #{external_attention.2} parent=35 // pred_fallthru
          _
      $region36: #{external_attention.2} parent=5 // pred_fallthru
        _
      %p851 = scmp.le.s32.totalorder 2, %s13
      // Predicated region
      $region91: #{external_attention.2} parent=5 // pred_check
        %p852 = pneg %p851
      $region92: #{external_attention.2} parent=5 // pred_check_branch
        %854 = sbr.rel (%p852) target = $region94
      $region93: #{external_attention.2} parent=5 // pred_region
        %s855 = ssub.s32 %s13, 2
        // Predicated region
        $region95: #{external_attention.2} parent=93 // pred_check
          %p856 = pneg %p147
        $region96: #{external_attention.2} parent=93 // pred_check_branch
          %858 = sbr.rel (%p856) target = $region98
        $region97: #{external_attention.2} parent=93 // pred_region
          %s859 = sand.u32 %s132, 1
          %s860 = sand.u32 %s132, 1
          %s861 = smul.addr %s860, 64
          %s862 = scalar_lea.vmem [#allocation4], %s861
        $region98: #{external_attention.2} parent=93 // pred_fallthru
          _
        // Predicated region
        $region99: #{external_attention.2} parent=93 // pred_check
          %p863 = pneg %p173
        $region100: #{external_attention.2} parent=93 // pred_check_branch
          %865 = sbr.rel (%p863) target = $region102
        $region101: #{external_attention.2} parent=93 // pred_region
          %p866 = scmp.lt.s32.totalorder %s24, 1
          %s867 = scalar_select %p866, %s24, 1
          %s868 = smul.addr %s867, 8
          %s869 = smul.addr %s868, 8
          %s870 = scalar_lea.vmem %s5, %s869
        $region102: #{external_attention.2} parent=93 // pred_fallthru
          _
        // Predicated region
        $region103: #{external_attention.2} parent=93 // pred_check
          %p871 = pneg %p199
        $region104: #{external_attention.2} parent=93 // pred_check_branch
          %873 = sbr.rel (%p871) target = $region106
        $region105: #{external_attention.2} parent=93 // pred_region
          %p874 = scmp.lt.s32.totalorder %s24, 1
          %s875 = scalar_select %p874, %s24, 1
          %s876 = smul.addr %s875, 8
          %s877 = smul.addr %s876, 8
          %s878 = scalar_lea.vmem %s6, %s877
        $region106: #{external_attention.2} parent=93 // pred_fallthru
          _
      $region94: #{external_attention.2} parent=5 // pred_fallthru
        _
    $region6: #{external_attention.2} parent=1 // loop_footer
      %s17 = sadd.s32 1, %s13
    $region7: #{external_attention.2} parent=1 // loop_footer_branch
      %12 = sbr.rel target = $region3
    $region8: #{external_attention.2} parent=1 // loop_exit
      _

</llo_original>
